<compile_context>
chip_gen: v7x
topology: tpu7x:2x2x1
jax: 0.10.0
libtpu: 0.0.40
codegen_flags: <defaults>
</compile_context>

<pallas_src>
import functools

import jax
import jax.numpy as jnp
from jax.experimental import pallas as pl
from jax.experimental.pallas import tpu as pltpu


def _round_up(x, m):
    return ((x + m - 1) // m) * m


# ----------------------------------------------------------------------------
# Fused kernel: MLPs -> SIMPA -> head -> softmax/log-softmax/argmax/L2-normalize
# ----------------------------------------------------------------------------
def sssnet_fused_kernel(x_ref, w0_ref, w1_ref, P_ref, N_ref, wprob_ref, bias_ref,
                        wp_ref, wn_ref,
                        z_ref, logp_ref, probpred_ref,
                        *, hop, d_pad, nclass, mm_dtype):
    f32 = jnp.float32
    hop_p = hop + 1
    hop_n = (hop + 1) * hop // 2

    # ---- fused MLPs: relu(x @ [w_p0 | w_n0]) @ blockdiag(w_p1, w_n1) -> (n, 2*d_pad)
    # columns [0:d_pad] hold x_p (real data [0:hidden]), [d_pad:2*d_pad] hold x_n.
    # TODO(synk): dropout is identity (eval mode); training-mode RNG masking not modeled.
    h = jnp.maximum(
        jnp.dot(x_ref[...], w0_ref[...], preferred_element_type=f32), 0.0)
    x_pn = jnp.dot(h.astype(mm_dtype), w1_ref[...], preferred_element_type=f32)

    P = P_ref[...]                               # already mm_dtype
    Nm = N_ref[...]
    wp = [wp_ref[i] for i in range(hop_p)]       # hoisted SMEM scalar reads
    wn = [wn_ref[i] for i in range(hop_n)]

    # ---- SIMPA (undirected); P applied to [curr_p | curr_n_aux] as one 256-wide slab
    feat_p = wp[0] * x_pn[:, :d_pad]
    feat_n = jnp.zeros_like(feat_p)
    curr_pn = x_pn
    j = 0
    for hh in range(hop_p):
        if hh > 0:
            if hh == hop_p - 1:
                # final hop: aux half never consumed again -> half-width matmul only
                curr_p = jnp.dot(P, curr_pn[:, :d_pad].astype(mm_dtype),
                                 preferred_element_type=f32)
                feat_p = feat_p + wp[hh] * curr_p
            else:
                curr_pn = jnp.dot(P, curr_pn.astype(mm_dtype),
                                  preferred_element_type=f32)
                feat_p = feat_p + wp[hh] * curr_pn[:, :d_pad]
        if hh != hop_p - 1:
            curr_n = jnp.dot(Nm, curr_pn[:, d_pad:].astype(mm_dtype),
                             preferred_element_type=f32)
            feat_n = feat_n + wn[j] * curr_n
            j += 1
            for _ in range(hop_p - 2 - hh):
                curr_n = jnp.dot(P, curr_n.astype(mm_dtype),
                                 preferred_element_type=f32)
                feat_n = feat_n + wn[j] * curr_n
                j += 1

    # [feat_p | feat_n] slab: tile-aligned concat, reused by head + L2 norm + z store.
    feat = jnp.concatenate([feat_p, feat_n], axis=1)          # (n, 2*d_pad), f32

    # ---- head: single K=2*d_pad matmul against stacked W_prob (f32 for exact argmax),
    #      precomputed bias row carries -1e30 in pad columns.
    logits = jnp.dot(feat, wprob_ref[...], preferred_element_type=f32) + bias_ref[...]

    n_nodes, CP = logits.shape
    m = jnp.max(logits, axis=1, keepdims=True)
    cols = jax.lax.broadcasted_iota(jnp.int32, (n_nodes, CP), 1)
    pred = jnp.min(jnp.where(logits == m, cols, CP), axis=1, keepdims=True)

    e = jnp.exp(logits - m)                       # pad columns underflow to exactly 0
    s = jnp.sum(e, axis=1, keepdims=True)
    # NOTE: approx EUP reciprocal -> prob rows sum to 1 +/- ~1e-3 (documented).
    prob = e * pl.reciprocal(s, approx=True)
    logp_ref[...] = (logits - m) - jnp.log(s)
    # fold integer predictions into the (unused) column `nclass` of the prob slab
    probpred_ref[...] = jnp.where(cols == nclass, pred.astype(f32), prob)

    # ---- F.normalize(z, p=2, dim=1): z * rsqrt(max(||z||^2, eps^2)); pad cols are 0
    sumsq = jnp.sum(feat * feat, axis=1, keepdims=True)
    inv_norm = jax.lax.rsqrt(jnp.maximum(sumsq, 1e-24))        # == 1 / max(||z||,1e-12)
    z_ref[...] = feat * inv_norm                               # single lane-dense store


# ----------------------------------------------------------------------------
# pallas_call wrapper (no grid: whole-array VMEM residents, no double-buffering)
# ----------------------------------------------------------------------------
def sssnet_pallas(x, w0, w1, P, N, wprob, bias_row, wp, wn, *, hop, d_pad, nclass):
    n = x.shape[0]
    CP = wprob.shape[1]
    hop_p = hop + 1
    hop_n = (hop + 1) * hop // 2
    mm_dtype = x.dtype

    kernel = functools.partial(sssnet_fused_kernel, hop=hop, d_pad=d_pad,
                               nclass=nclass, mm_dtype=mm_dtype)

    vmem = pl.BlockSpec(memory_space=pltpu.MemorySpace.VMEM)
    smem = pl.BlockSpec(memory_space=pltpu.MemorySpace.SMEM)

    out_shape = (jax.ShapeDtypeStruct((n, 2 * d_pad), jnp.float32),   # z (padded)
                 jax.ShapeDtypeStruct((n, CP), jnp.float32),          # log_softmax (padded)
                 jax.ShapeDtypeStruct((n, CP), jnp.float32))          # [softmax | pred | 0..]

    # ---- cost estimate + explicit VMEM budget --------------------------------
    def nbytes(a):
        return int(a.size) * jnp.dtype(a.dtype).itemsize

    in_bytes = sum(nbytes(a) for a in (x, w0, w1, P, N, wprob, bias_row, wp, wn))
    out_bytes = (n * 2 * d_pad + 2 * n * CP) * 4
    slab_hops = max(hop_p - 2, 0)                 # full-width (2*d_pad) P matmuls
    last_hop = 1 if hop_p >= 2 else 0             # half-width final P matmul
    hop_cols = slab_hops * 2 * d_pad + last_hop * d_pad + hop_n * d_pad
    flops = (2 * n * x.shape[1] * w0.shape[1]     # MLP layer 1
             + 2 * n * w1.shape[0] * w1.shape[1]  # MLP layer 2
             + 2 * n * n * hop_cols               # SIMPA hop chain
             + 2 * n * (2 * d_pad) * CP)          # head
    transcendentals = n * (CP + 3)                # exp row + log + rsqrt + recip
    act_bytes = n * 2 * d_pad * 4 * 8 + n * CP * 4 * 4      # live f32 slabs (generous)
    vmem_limit = int(1.5 * (in_bytes + out_bytes + act_bytes))
    vmem_limit = min(max(vmem_limit, 16 << 20), 96 << 20)

    return pl.pallas_call(
        kernel,
        out_shape=out_shape,
        in_specs=[vmem, vmem, vmem, vmem, vmem, vmem, vmem, smem, smem],
        out_specs=(vmem, vmem, vmem),
        compiler_params=pltpu.CompilerParams(vmem_limit_bytes=vmem_limit),
        cost_estimate=pl.CostEstimate(flops=flops, transcendentals=transcendentals,
                                      bytes_accessed=in_bytes + out_bytes),
    )(x, w0, w1, P, N, wprob, bias_row, wp, wn)


# ----------------------------------------------------------------------------
# Graph normalization glue (conv_norm_rw semantics, materialized densely)
# ----------------------------------------------------------------------------
def build_norm_adj(edge_index, edge_weight, num_nodes, fill_value):
    """Dense D_row^{-1} (A + fill*I): out = P @ x reproduces SIMPA_Base propagate
    (aggr='add', flow='target_to_source', row-normalized).  Assumes the edge list
    has no pre-existing self-loops (true for the synthetic graph below)."""
    A = jnp.zeros((num_nodes, num_nodes), jnp.float32)
    A = A.at[edge_index[0], edge_index[1]].add(edge_weight)
    A = A + fill_value * jnp.eye(num_nodes, dtype=jnp.float32)
    deg = A.sum(axis=1)
    deg_inv = jnp.where(deg == 0.0, 0.0, 1.0 / deg)
    return deg_inv[:, None] * A


# ----------------------------------------------------------------------------
# SSSNET forward (undirected)
# ----------------------------------------------------------------------------
@functools.partial(jax.jit, static_argnames=("hop", "use_bf16"))
def sssnet_forward(params, edge_index_p, edge_weight_p, edge_index_n,
                   edge_weight_n, features, *, hop, fill_value, use_bf16=True):
    num_nodes = features.shape[0]
    hidden = params["w_p0"].shape[1]
    nclass = params["W_prob"].shape[1]
    d_pad = _round_up(hidden, 128)             # lane-tile-aligned hidden half
    CP = _round_up(nclass + 1, 128)            # lane-dense head width (+1 pred column)
    mm_dt = jnp.bfloat16 if use_bf16 else jnp.float32

    # Fused MLP weights: (nfeat, 2h) first layer + block-structured second layer whose
    # output columns are padded so x_p lands in [0:d_pad) and x_n in [d_pad:2*d_pad).
    w0_cat = jnp.concatenate([params["w_p0"], params["w_n0"]], axis=1).astype(mm_dt)
    w1_blk = jnp.zeros((2 * hidden, 2 * d_pad), jnp.float32)
    w1_blk = w1_blk.at[:hidden, :hidden].set(params["w_p1"])
    w1_blk = w1_blk.at[hidden:, d_pad:d_pad + hidden].set(params["w_n1"])
    w1_blk = w1_blk.astype(mm_dt)

    # Stacked + lane-padded head weights (single K=2*d_pad matmul in-kernel) and the
    # padded bias row (-1e30 in pad columns keeps softmax/argmax untouched).
    wprob = jnp.zeros((2 * d_pad, CP), jnp.float32)
    wprob = wprob.at[:hidden, :nclass].set(params["W_prob"][:hidden])
    wprob = wprob.at[d_pad:d_pad + hidden, :nclass].set(params["W_prob"][hidden:])
    bias_row = jnp.full((1, CP), -1e30, jnp.float32).at[0, :nclass].set(params["bias"])

    # Row-normalized dense adjacencies (bf16 halves their VMEM footprint; rows <= 1).
    P = build_norm_adj(edge_index_p, edge_weight_p, num_nodes, fill_value).astype(mm_dt)
    N = build_norm_adj(edge_index_n, edge_weight_n, num_nodes, 0.0).astype(mm_dt)

    wp_flat = params["w_p"].reshape(-1)
    wn_flat = params["w_n"].reshape(-1)
    if wn_flat.shape[0] == 0:                     # hop=0 degenerate case
        wn_flat = jnp.zeros((1,), jnp.float32)

    z_pad, logp_pad, probpred = sssnet_pallas(
        features.astype(mm_dt), w0_cat, w1_blk, P, N, wprob, bias_row,
        wp_flat, wn_flat, hop=hop, d_pad=d_pad, nclass=nclass)

    z_norm = jnp.concatenate(
        [z_pad[:, :hidden], z_pad[:, d_pad:d_pad + hidden]], axis=1)
    logp = logp_pad[:, :nclass]
    prob = probpred[:, :nclass]
    pred = probpred[:, nclass].astype(jnp.int32)
    return z_norm, logp, pred, prob


# ----------------------------------------------------------------------------
# Pure-JAX reference (for a correctness smoke test)
# ----------------------------------------------------------------------------
def sssnet_reference(params, edge_index_p, edge_weight_p, edge_index_n,
                     edge_weight_n, features, hop, fill_value):
    num_nodes = features.shape[0]
    x_p = jnp.maximum(features @ params["w_p0"], 0.0) @ params["w_p1"]
    x_n = jnp.maximum(features @ params["w_n0"], 0.0) @ params["w_n1"]
    P = build_norm_adj(edge_index_p, edge_weight_p, num_nodes, fill_value)
    N = build_norm_adj(edge_index_n, edge_weight_n, num_nodes, 0.0)
    hop_p = hop + 1
    w_p = params["w_p"][:, 0]
    w_n = params["w_n"][:, 0]
    feat_p = w_p[0] * x_p
    feat_n = jnp.zeros_like(feat_p)
    curr_p, curr_n_aux = x_p, x_n
    j = 0
    for h in range(hop_p):
        if h > 0:
            curr_p = P @ curr_p
            curr_n_aux = P @ curr_n_aux
            feat_p = feat_p + w_p[h] * curr_p
        if h != hop_p - 1:
            curr_n = N @ curr_n_aux
            feat_n = feat_n + w_n[j] * curr_n
            j += 1
            for _ in range(hop_p - 2 - h):
                curr_n = P @ curr_n
                feat_n = feat_n + w_n[j] * curr_n
                j += 1
    z = jnp.concatenate([feat_p, feat_n], axis=1)
    logits = z @ params["W_prob"] + params["bias"]
    pred = jnp.argmax(logits, axis=1).astype(jnp.int32)
    m = jnp.max(logits, axis=1, keepdims=True)
    e = jnp.exp(logits - m)
    s = jnp.sum(e, axis=1, keepdims=True)
    prob = e / s
    logp = (logits - m) - jnp.log(s)
    norm = jnp.sqrt(jnp.sum(z * z, axis=1, keepdims=True))
    z_norm = z / jnp.maximum(norm, 1e-12)
    return z_norm, logp, pred, prob


# ----------------------------------------------------------------------------
# Deterministic parameter / input construction
# ----------------------------------------------------------------------------
def xavier_uniform(key, shape, gain=1.414):
    fan_in, fan_out = shape
    bound = gain * (6.0 / (fan_in + fan_out)) ** 0.5
    return jax.random.uniform(key, shape, jnp.float32, -bound, bound)


if __name__ == "__main__":
    num_nodes = 64
    nfeat = 16
    hidden = 32
    nclass = 4
    hop = 2
    fill_value = 0.5
    hop_p = hop + 1
    hop_n = (1 + hop) * hop // 2

    key = jax.random.PRNGKey(0)
    keys = jax.random.split(key, 8)

    params = {
        "w_p0": xavier_uniform(keys[0], (nfeat, hidden)),
        "w_p1": xavier_uniform(keys[1], (hidden, hidden)),
        "w_n0": xavier_uniform(keys[2], (nfeat, hidden)),
        "w_n1": xavier_uniform(keys[3], (hidden, hidden)),
        "W_prob": xavier_uniform(keys[4], (2 * hidden, nclass)),
        "bias": jnp.zeros((nclass,), jnp.float32),
        # SIMPA hop weights (init to 1.0 like the PyTorch module)
        "w_p": jnp.ones((hop_p, 1), jnp.float32),
        "w_n": jnp.ones((hop_n, 1), jnp.float32),
    }

    # Synthetic undirected signed graph (both directions listed, no self-loops).
    nodes = jnp.arange(num_nodes, dtype=jnp.int32)
    src_p = jnp.concatenate([nodes, (nodes + 1) % num_nodes])
    dst_p = jnp.concatenate([(nodes + 1) % num_nodes, nodes])
    edge_index_p = jnp.stack([src_p, dst_p])
    edge_weight_p = jnp.ones((edge_index_p.shape[1],), jnp.float32)

    src_n = jnp.concatenate([nodes, (nodes + 3) % num_nodes])
    dst_n = jnp.concatenate([(nodes + 3) % num_nodes, nodes])
    edge_index_n = jnp.stack([src_n, dst_n])
    edge_weight_n = jnp.ones((edge_index_n.shape[1],), jnp.float32)

    features = jax.random.normal(keys[5], (num_nodes, nfeat), jnp.float32)

    # Pure-JAX reference.
    z_ref, logp_ref, pred_ref, prob_ref = sssnet_reference(
        params, edge_index_p, edge_weight_p, edge_index_n, edge_weight_n,
        features, hop, fill_value)

    # ---- default fast path: bf16 matmul inputs, f32 accumulation -------------
    z_norm, logp, pred, prob = sssnet_forward(
        params, edge_index_p, edge_weight_p, edge_index_n, edge_weight_n,
        features, hop=hop, fill_value=fill_value, use_bf16=True)
    jax.block_until_ready((z_norm, logp, pred, prob))

    assert z_norm.shape == (num_nodes, 2 * hidden)
    assert logp.shape == (num_nodes, nclass)
    assert pred.shape == (num_nodes,) and pred.dtype == jnp.int32
    assert prob.shape == (num_nodes, nclass)
    assert jnp.allclose(z_norm, z_ref, atol=1e-1, rtol=1e-1)
    assert jnp.allclose(logp, logp_ref, atol=1e-1, rtol=1e-1)
    assert jnp.allclose(prob, prob_ref, atol=1e-1, rtol=1e-1)
    assert jnp.allclose(prob.sum(axis=1), 1.0, atol=1e-2)
    # predictions are consistent with the kernel's own log-probabilities
    assert jnp.array_equal(pred, jnp.argmax(logp, axis=1).astype(jnp.int32))

    # ---- f32 path: tighter numerical check (approx reciprocal / MXU ordering) -
    z32, logp32, pred32, prob32 = sssnet_forward(
        params, edge_index_p, edge_weight_p, edge_index_n, edge_weight_n,
        features, hop=hop, fill_value=fill_value, use_bf16=False)
    jax.block_until_ready((z32, logp32, pred32, prob32))
    assert jnp.allclose(z32, z_ref, atol=1e-2, rtol=1e-2)
    assert jnp.allclose(logp32, logp_ref, atol=1e-2, rtol=1e-2)
    assert jnp.allclose(prob32, prob_ref, atol=1e-2, rtol=1e-2)
    assert jnp.array_equal(pred32, jnp.argmax(logp32, axis=1).astype(jnp.int32))

    print("KERNEL_OK")
</pallas_src>

<mosaic_0001>
module attributes {stable_mosaic.version = 11 : i64} {
  func.func private @main(%arg0: i32) attributes {dimension_semantics = [#tpu.dimension_semantics<core_parallel>], iteration_bounds = array<i64: 2>, tpu.core_type = #tpu.core_type<sc_scalar_subcore>, window_params = []} {
    return
  }
}

module attributes {stable_mosaic.version = 11 : i64} {
  func.func private @main(%arg0: i32) attributes {dimension_semantics = [#tpu.dimension_semantics<core_parallel>], iteration_bounds = array<i64: 2>, tpu.core_type = #tpu.core_type<sc_scalar_subcore>, window_params = []} {
    return
  }
}

module attributes {stable_mosaic.version = 11 : i64} {
  func.func @sssnet_fused_kernel(%arg0: memref<64x16xbf16, #tpu.memory_space<vmem>>, %arg1: memref<16x64xbf16, #tpu.memory_space<vmem>>, %arg2: memref<64x256xbf16, #tpu.memory_space<vmem>>, %arg3: memref<64x64xbf16, #tpu.memory_space<vmem>>, %arg4: memref<64x64xbf16, #tpu.memory_space<vmem>>, %arg5: memref<256x128xf32, #tpu.memory_space<vmem>>, %arg6: memref<1x128xf32, #tpu.memory_space<vmem>>, %arg7: memref<3xf32, #tpu.memory_space<smem>>, %arg8: memref<3xf32, #tpu.memory_space<smem>>, %arg9: memref<64x256xf32, #tpu.memory_space<vmem>>, %arg10: memref<64x128xf32, #tpu.memory_space<vmem>>, %arg11: memref<64x128xf32, #tpu.memory_space<vmem>>) attributes {dimension_semantics = [], scalar_prefetch = 0 : i64, scratch_operands = 0 : i64, tpu.core_type = #tpu.core_type<tc>} {
    %c0 = arith.constant 0 : index
    %c0_0 = arith.constant 0 : index
    %0 = vector.load %arg0[%c0, %c0_0] : memref<64x16xbf16, #tpu.memory_space<vmem>>, vector<64x16xbf16>
    %c0_1 = arith.constant 0 : index
    %c0_2 = arith.constant 0 : index
    %1 = vector.load %arg1[%c0_1, %c0_2] : memref<16x64xbf16, #tpu.memory_space<vmem>>, vector<16x64xbf16>
    %cst = arith.constant dense<0.000000e+00> : vector<64x64xf32>
    %2 = tpu.matmul %0, %1, %cst {dimension_numbers = #tpu.dot_dimension_numbers<[1], [0], [0], [1], [0, 0, 1, 1], [], []>} : vector<64x16xbf16>, vector<16x64xbf16>, vector<64x64xf32> -> vector<64x64xf32>
    %cst_3 = arith.constant 0.000000e+00 : f32
    %3 = vector.broadcast %cst_3 : f32 to vector<64x64xf32>
    %4 = arith.maximumf %2, %3 : vector<64x64xf32>
    %5 = arith.truncf %4 : vector<64x64xf32> to vector<64x64xbf16>
    %c0_4 = arith.constant 0 : index
    %c0_5 = arith.constant 0 : index
    %6 = vector.load %arg2[%c0_4, %c0_5] : memref<64x256xbf16, #tpu.memory_space<vmem>>, vector<64x256xbf16>
    %cst_6 = arith.constant dense<0.000000e+00> : vector<64x256xf32>
    %7 = tpu.matmul %5, %6, %cst_6 {dimension_numbers = #tpu.dot_dimension_numbers<[1], [0], [0], [1], [0, 0, 1, 1], [], []>} : vector<64x64xbf16>, vector<64x256xbf16>, vector<64x256xf32> -> vector<64x256xf32>
    %c0_7 = arith.constant 0 : index
    %c0_8 = arith.constant 0 : index
    %8 = vector.load %arg3[%c0_7, %c0_8] : memref<64x64xbf16, #tpu.memory_space<vmem>>, vector<64x64xbf16>
    %c0_9 = arith.constant 0 : index
    %c0_10 = arith.constant 0 : index
    %9 = vector.load %arg4[%c0_9, %c0_10] : memref<64x64xbf16, #tpu.memory_space<vmem>>, vector<64x64xbf16>
    %c0_11 = arith.constant 0 : index
    %10 = memref.load %arg7[%c0_11] : memref<3xf32, #tpu.memory_space<smem>>
    %c1 = arith.constant 1 : index
    %11 = memref.load %arg7[%c1] : memref<3xf32, #tpu.memory_space<smem>>
    %c2 = arith.constant 2 : index
    %12 = memref.load %arg7[%c2] : memref<3xf32, #tpu.memory_space<smem>>
    %c0_12 = arith.constant 0 : index
    %13 = memref.load %arg8[%c0_12] : memref<3xf32, #tpu.memory_space<smem>>
    %c1_13 = arith.constant 1 : index
    %14 = memref.load %arg8[%c1_13] : memref<3xf32, #tpu.memory_space<smem>>
    %c2_14 = arith.constant 2 : index
    %15 = memref.load %arg8[%c2_14] : memref<3xf32, #tpu.memory_space<smem>>
    %16 = vector.extract_strided_slice %7 {offsets = [0, 0], sizes = [64, 128], strides = [1, 1]} : vector<64x256xf32> to vector<64x128xf32>
    %17 = vector.broadcast %10 : f32 to vector<64x128xf32>
    %18 = arith.mulf %17, %16 : vector<64x128xf32>
    %cst_15 = arith.constant 0.000000e+00 : f32
    %19 = vector.broadcast %cst_15 : f32 to vector<64x128xf32>
    %20 = vector.extract_strided_slice %7 {offsets = [0, 128], sizes = [64, 128], strides = [1, 1]} : vector<64x256xf32> to vector<64x128xf32>
    %21 = arith.truncf %20 : vector<64x128xf32> to vector<64x128xbf16>
    %cst_16 = arith.constant dense<0.000000e+00> : vector<64x128xf32>
    %22 = tpu.matmul %9, %21, %cst_16 {dimension_numbers = #tpu.dot_dimension_numbers<[1], [0], [0], [1], [0, 0, 1, 1], [], []>} : vector<64x64xbf16>, vector<64x128xbf16>, vector<64x128xf32> -> vector<64x128xf32>
    %23 = vector.broadcast %13 : f32 to vector<64x128xf32>
    %24 = arith.mulf %23, %22 : vector<64x128xf32>
    %25 = arith.addf %19, %24 : vector<64x128xf32>
    %26 = arith.truncf %22 : vector<64x128xf32> to vector<64x128xbf16>
    %cst_17 = arith.constant dense<0.000000e+00> : vector<64x128xf32>
    %27 = tpu.matmul %8, %26, %cst_17 {dimension_numbers = #tpu.dot_dimension_numbers<[1], [0], [0], [1], [0, 0, 1, 1], [], []>} : vector<64x64xbf16>, vector<64x128xbf16>, vector<64x128xf32> -> vector<64x128xf32>
    %28 = vector.broadcast %14 : f32 to vector<64x128xf32>
    %29 = arith.mulf %28, %27 : vector<64x128xf32>
    %30 = arith.addf %25, %29 : vector<64x128xf32>
    %31 = arith.truncf %7 : vector<64x256xf32> to vector<64x256xbf16>
    %cst_18 = arith.constant dense<0.000000e+00> : vector<64x256xf32>
    %32 = tpu.matmul %8, %31, %cst_18 {dimension_numbers = #tpu.dot_dimension_numbers<[1], [0], [0], [1], [0, 0, 1, 1], [], []>} : vector<64x64xbf16>, vector<64x256xbf16>, vector<64x256xf32> -> vector<64x256xf32>
    %33 = vector.extract_strided_slice %32 {offsets = [0, 0], sizes = [64, 128], strides = [1, 1]} : vector<64x256xf32> to vector<64x128xf32>
    %34 = vector.broadcast %11 : f32 to vector<64x128xf32>
    %35 = arith.mulf %34, %33 : vector<64x128xf32>
    %36 = arith.addf %18, %35 : vector<64x128xf32>
    %37 = vector.extract_strided_slice %32 {offsets = [0, 128], sizes = [64, 128], strides = [1, 1]} : vector<64x256xf32> to vector<64x128xf32>
    %38 = arith.truncf %37 : vector<64x128xf32> to vector<64x128xbf16>
    %cst_19 = arith.constant dense<0.000000e+00> : vector<64x128xf32>
    %39 = tpu.matmul %9, %38, %cst_19 {dimension_numbers = #tpu.dot_dimension_numbers<[1], [0], [0], [1], [0, 0, 1, 1], [], []>} : vector<64x64xbf16>, vector<64x128xbf16>, vector<64x128xf32> -> vector<64x128xf32>
    %40 = vector.broadcast %15 : f32 to vector<64x128xf32>
    %41 = arith.mulf %40, %39 : vector<64x128xf32>
    %42 = arith.addf %30, %41 : vector<64x128xf32>
    %43 = vector.extract_strided_slice %32 {offsets = [0, 0], sizes = [64, 128], strides = [1, 1]} : vector<64x256xf32> to vector<64x128xf32>
    %44 = arith.truncf %43 : vector<64x128xf32> to vector<64x128xbf16>
    %cst_20 = arith.constant dense<0.000000e+00> : vector<64x128xf32>
    %45 = tpu.matmul %8, %44, %cst_20 {dimension_numbers = #tpu.dot_dimension_numbers<[1], [0], [0], [1], [0, 0, 1, 1], [], []>} : vector<64x64xbf16>, vector<64x128xbf16>, vector<64x128xf32> -> vector<64x128xf32>
    %46 = vector.broadcast %12 : f32 to vector<64x128xf32>
    %47 = arith.mulf %46, %45 : vector<64x128xf32>
    %48 = arith.addf %36, %47 : vector<64x128xf32>
    %49 = tpu.concatenate %48, %42 in 1 : vector<64x128xf32>, vector<64x128xf32> -> vector<64x256xf32>
    %c0_21 = arith.constant 0 : index
    %c0_22 = arith.constant 0 : index
    %50 = vector.load %arg5[%c0_21, %c0_22] : memref<256x128xf32, #tpu.memory_space<vmem>>, vector<256x128xf32>
    %cst_23 = arith.constant dense<0.000000e+00> : vector<64x128xf32>
    %51 = tpu.matmul %49, %50, %cst_23 {dimension_numbers = #tpu.dot_dimension_numbers<[1], [0], [0], [1], [0, 0, 1, 1], [], []>} : vector<64x256xf32>, vector<256x128xf32>, vector<64x128xf32> -> vector<64x128xf32>
    %c0_24 = arith.constant 0 : index
    %c0_25 = arith.constant 0 : index
    %52 = vector.load %arg6[%c0_24, %c0_25] : memref<1x128xf32, #tpu.memory_space<vmem>>, vector<1x128xf32>
    %53 = vector.broadcast %52 : vector<1x128xf32> to vector<64x128xf32>
    %54 = arith.addf %51, %53 : vector<64x128xf32>
    %cst_26 = arith.constant dense<0xFF800000> : vector<64xf32>
    %55 = vector.multi_reduction <maximumf>, %54, %cst_26 [1] : vector<64x128xf32> to vector<64xf32>
    %56 = vector.shape_cast %55 : vector<64xf32> to vector<64x1xf32>
    %57 = tpu.iota {dimensions = array<i32: 1>} : vector<64x128xi32>
    %58 = vector.broadcast %56 : vector<64x1xf32> to vector<64x128xf32>
    %59 = arith.cmpf oeq, %54, %58 : vector<64x128xf32>
    %c128_i32 = arith.constant 128 : i32
    %60 = vector.broadcast %c128_i32 : i32 to vector<64x128xi32>
    %61 = arith.select %59, %57, %60 : vector<64x128xi1>, vector<64x128xi32>
    %cst_27 = arith.constant dense<2147483647> : vector<64xi32>
    %62 = vector.multi_reduction <minsi>, %61, %cst_27 [1] : vector<64x128xi32> to vector<64xi32>
    %63 = vector.shape_cast %62 : vector<64xi32> to vector<64x1xi32>
    %64 = vector.broadcast %56 : vector<64x1xf32> to vector<64x128xf32>
    %65 = arith.subf %54, %64 : vector<64x128xf32>
    %66 = math.exp %65 : vector<64x128xf32>
    %cst_28 = arith.constant dense<0.000000e+00> : vector<64xf32>
    %67 = vector.multi_reduction <add>, %66, %cst_28 [1] : vector<64x128xf32> to vector<64xf32>
    %68 = vector.shape_cast %67 : vector<64xf32> to vector<64x1xf32>
    %69 = tpu.reciprocal %68 {approx = true} : vector<64x1xf32> -> vector<64x1xf32>
    %70 = vector.broadcast %69 : vector<64x1xf32> to vector<64x128xf32>
    %71 = arith.mulf %66, %70 : vector<64x128xf32>
    %72 = vector.broadcast %56 : vector<64x1xf32> to vector<64x128xf32>
    %73 = arith.subf %54, %72 : vector<64x128xf32>
    %74 = math.log %68 : vector<64x1xf32>
    %75 = vector.broadcast %74 : vector<64x1xf32> to vector<64x128xf32>
    %76 = arith.subf %73, %75 : vector<64x128xf32>
    %c0_29 = arith.constant 0 : index
    %c0_30 = arith.constant 0 : index
    %77 = vector.load %arg10[%c0_29, %c0_30] : memref<64x128xf32, #tpu.memory_space<vmem>>, vector<64x128xf32>
    tpu.vector_store %arg10[%c0_29, %c0_30], %76 {strides = array<i32>} : memref<64x128xf32, #tpu.memory_space<vmem>>, vector<64x128xf32>,
    %c4_i32 = arith.constant 4 : i32
    %78 = vector.broadcast %c4_i32 : i32 to vector<64x128xi32>
    %79 = arith.cmpi eq, %57, %78 : vector<64x128xi32>
    %80 = arith.sitofp %63 : vector<64x1xi32> to vector<64x1xf32>
    %81 = vector.shape_cast %80 : vector<64x1xf32> to vector<64x1xf32>
    %82 = vector.broadcast %81 : vector<64x1xf32> to vector<64x128xf32>
    %83 = arith.select %79, %82, %71 : vector<64x128xi1>, vector<64x128xf32>
    %c0_31 = arith.constant 0 : index
    %c0_32 = arith.constant 0 : index
    %84 = vector.load %arg11[%c0_31, %c0_32] : memref<64x128xf32, #tpu.memory_space<vmem>>, vector<64x128xf32>
    tpu.vector_store %arg11[%c0_31, %c0_32], %83 {strides = array<i32>} : memref<64x128xf32, #tpu.memory_space<vmem>>, vector<64x128xf32>,
    %85 = arith.mulf %49, %49 : vector<64x256xf32>
    %cst_33 = arith.constant dense<0.000000e+00> : vector<64xf32>
    %86 = vector.multi_reduction <add>, %85, %cst_33 [1] : vector<64x256xf32> to vector<64xf32>
    %87 = vector.shape_cast %86 : vector<64xf32> to vector<64x1xf32>
    %cst_34 = arith.constant 1.000000e-24 : f32
    %88 = vector.broadcast %cst_34 : f32 to vector<64x1xf32>
    %89 = arith.maximumf %87, %88 : vector<64x1xf32>
    %90 = math.rsqrt %89 : vector<64x1xf32>
    %91 = vector.broadcast %90 : vector<64x1xf32> to vector<64x256xf32>
    %92 = arith.mulf %49, %91 : vector<64x256xf32>
    %c0_35 = arith.constant 0 : index
    %c0_36 = arith.constant 0 : index
    %93 = vector.load %arg9[%c0_35, %c0_36] : memref<64x256xf32, #tpu.memory_space<vmem>>, vector<64x256xf32>
    tpu.vector_store %arg9[%c0_35, %c0_36], %92 {strides = array<i32>} : memref<64x256xf32, #tpu.memory_space<vmem>>, vector<64x256xf32>,
    return
  }
}

</mosaic_0001>

<llo_original>
// kernel: sssnet_forward.1
$region0: #{sssnet_forward.1}
  #allocation0 [shape = 'u32[]', space=smem, size = 0x4, offset = 0x4, fixed_abs, tag = 'smem constant byte address 0x4 - core index']
  #allocation1 [shape = 'u32[144,128]{1,0:T(1,128)}', space=vmem, size = 0x12000, scoped, tag = 'internal scratch']
  %s0 = inlined_call_operand.vmem [shape: bf16[64,16], index: 0, kind: input, shape index: {}]
  %s1 = inlined_call_operand.vmem [shape: bf16[16,64], index: 1, kind: input, shape index: {}]
  %s2 = inlined_call_operand.vmem [shape: bf16[64,256], index: 2, kind: input, shape index: {}]
  %s3 = inlined_call_operand.vmem [shape: bf16[64,64], index: 3, kind: input, shape index: {}]
  %s4 = inlined_call_operand.vmem [shape: bf16[64,64], index: 4, kind: input, shape index: {}]
  %s5 = inlined_call_operand.vmem [shape: f32[256,128], index: 5, kind: input, shape index: {}]
  %s6 = inlined_call_operand.vmem [shape: f32[1,128], index: 6, kind: input, shape index: {}]
  %s7 = inlined_call_operand.vmem [shape: f32[3], index: 7, kind: input, shape index: {}]
  %s8 = inlined_call_operand.vmem [shape: f32[3], index: 8, kind: input, shape index: {}]
  %s9 = inlined_call_operand.vmem [shape: f32[64,256], index: 9, kind: output, shape index: {0}]
  %s10 = inlined_call_operand.vmem [shape: f32[64,128], index: 10, kind: output, shape index: {1}]
  %s11 = inlined_call_operand.vmem [shape: f32[64,128], index: 11, kind: output, shape index: {2}]
  %12 = xla_tuple %s9, %s10, %s11
  %s13 = sld [smem:[#allocation0]]
  $region70: #{sssnet_forward.1} parent=0
    _
  %s15 = ssub.s32 1, %s13
  %s16 = scalar_select 0, %s15, %s13
  $region1: #{sssnet_forward.1} parent=0
    #allocation2 [shape = 'u8[512]{0}', space=smem, size = 0x200, scoped, tag = 'input window, operand 7, single buffered']
    #allocation3 [shape = 's32[1]{0}', space=sflag, size = 0x4, scoped, tag = 'scoped memory for sssnet_forward.1']
    #allocation4 [shape = 'u8[512]{0}', space=smem, size = 0x200, scoped, tag = 'input window, operand 8, single buffered']
    #allocation5 [shape = 's32[1]{0}', space=sflag, size = 0x4, scoped, tag = 'scoped memory for sssnet_forward.1']
    %17 = vsyncpa [#allocation3], 0
    %18 = vsyncpa [#allocation5], 0
    // Predicated region
    $region2: #{sssnet_forward.1} parent=1 // pred_check
      _
    $region3: #{sssnet_forward.1} parent=1 // pred_check_branch
      %20 = sbr.rel (0) target = $region5
    $region4: #{sssnet_forward.1} parent=1 // pred_region
      _
    $region5: #{sssnet_forward.1} parent=1 // pred_fallthru
      _
    // Predicated region
    $region6: #{sssnet_forward.1} parent=1 // pred_check
      _
    $region7: #{sssnet_forward.1} parent=1 // pred_check_branch
      %22 = sbr.rel (0) target = $region9
    $region8: #{sssnet_forward.1} parent=1 // pred_region
      _
    $region9: #{sssnet_forward.1} parent=1 // pred_fallthru
      _
    // Predicated region
    $region10: #{sssnet_forward.1} parent=1 // pred_check
      _
    $region11: #{sssnet_forward.1} parent=1 // pred_check_branch
      %24 = sbr.rel (0) target = $region13
    $region12: #{sssnet_forward.1} parent=1 // pred_region
      _
    $region13: #{sssnet_forward.1} parent=1 // pred_fallthru
      _
    // Predicated region
    $region14: #{sssnet_forward.1} parent=1 // pred_check
      _
    $region15: #{sssnet_forward.1} parent=1 // pred_check_branch
      %26 = sbr.rel (0) target = $region17
    $region16: #{sssnet_forward.1} parent=1 // pred_region
      _
    $region17: #{sssnet_forward.1} parent=1 // pred_fallthru
      _
    // Predicated region
    $region18: #{sssnet_forward.1} parent=1 // pred_check
      _
    $region19: #{sssnet_forward.1} parent=1 // pred_check_branch
      %28 = sbr.rel (0) target = $region21
    $region20: #{sssnet_forward.1} parent=1 // pred_region
      _
    $region21: #{sssnet_forward.1} parent=1 // pred_fallthru
      _
    // Predicated region
    $region22: #{sssnet_forward.1} parent=1 // pred_check
      _
    $region23: #{sssnet_forward.1} parent=1 // pred_check_branch
      %30 = sbr.rel (0) target = $region25
    $region24: #{sssnet_forward.1} parent=1 // pred_region
      _
    $region25: #{sssnet_forward.1} parent=1 // pred_fallthru
      _
    // Predicated region
    $region26: #{sssnet_forward.1} parent=1 // pred_check
      _
    $region27: #{sssnet_forward.1} parent=1 // pred_check_branch
      %32 = sbr.rel (0) target = $region29
    $region28: #{sssnet_forward.1} parent=1 // pred_region
      _
    $region29: #{sssnet_forward.1} parent=1 // pred_fallthru
      _
    // Predicated region
    $region30: #{sssnet_forward.1} parent=1 // pred_check
      _
    $region31: #{sssnet_forward.1} parent=1 // pred_check_branch
      %34 = sbr.rel (0) target = $region33
    $region32: #{sssnet_forward.1} parent=1 // pred_region
      %s36 = ssub.s32 16, 16
      %37 = vsyncadd [#allocation3], %s36
      %s39 = sshll.u32 %s7, 4
      %s40 = int_to_ptr.vmem [resolvable:$true] %s39
      %42 = dma.vmem_to_smem %s40, 16, [#allocation2], [#allocation3]
    $region33: #{sssnet_forward.1} parent=1 // pred_fallthru
      _
    // Predicated region
    $region34: #{sssnet_forward.1} parent=1 // pred_check
      _
    $region35: #{sssnet_forward.1} parent=1 // pred_check_branch
      %44 = sbr.rel (0) target = $region37
    $region36: #{sssnet_forward.1} parent=1 // pred_region
      %s46 = ssub.s32 16, 16
      %47 = vsyncadd [#allocation5], %s46
      %s49 = sshll.u32 %s8, 4
      %s50 = int_to_ptr.vmem [resolvable:$true] %s49
      %52 = dma.vmem_to_smem %s50, 16, [#allocation4], [#allocation5]
    $region37: #{sssnet_forward.1} parent=1 // pred_fallthru
      _
    // Predicated region
    $region38: #{sssnet_forward.1} parent=1 // pred_check
      _
    $region39: #{sssnet_forward.1} parent=1 // pred_check_branch
      %54 = sbr.rel (0) target = $region41
    $region40: #{sssnet_forward.1} parent=1 // pred_region
      %55 = dma.done [#allocation3], 16
    $region41: #{sssnet_forward.1} parent=1 // pred_fallthru
      _
    // Predicated region
    $region42: #{sssnet_forward.1} parent=1 // pred_check
      _
    $region43: #{sssnet_forward.1} parent=1 // pred_check_branch
      %57 = sbr.rel (0) target = $region45
    $region44: #{sssnet_forward.1} parent=1 // pred_region
      %58 = dma.done [#allocation5], 16
    $region45: #{sssnet_forward.1} parent=1 // pred_fallthru
      _
    %59 = sfence
    %v61 = vld [vmem:[%s0] sm:$0xf]
    %v62 = vld [vmem:[%s0 + $0x4] sm:$0xf]
    %v63 = vld [vmem:[%s0 + $0x8] sm:$0xf]
    %v64 = vld [vmem:[%s0 + $0xc] sm:$0xf]
    %v65 = vld [vmem:[%s0 + $0x10] sm:$0xf]
    %v66 = vld [vmem:[%s0 + $0x14] sm:$0xf]
    %v67 = vld [vmem:[%s0 + $0x18] sm:$0xf]
    %v68 = vld [vmem:[%s0 + $0x1c] sm:$0xf]
    %v69 = vld [vmem:[%s1] sm:$0xf]
    %v70 = vld [vmem:[%s1 + $0x4] sm:$0xf]
    %v79 = vunpack.c.l.b16 %v61
    %v80 = vunpack.c.l.b16 %v62
    %v81 = vunpack.c.l.b16 %v63
    %v82 = vunpack.c.l.b16 %v64
    %v83 = vunpack.c.l.b16 %v65
    %v84 = vunpack.c.l.b16 %v66
    %v85 = vunpack.c.l.b16 %v67
    %v86 = vunpack.c.l.b16 %v68
    %v87 = vpack.c.b16 %v80, %v79
    %v88 = vpack.c.b16 %v82, %v81
    %v89 = vpack.c.b16 %v84, %v83
    %v90 = vpack.c.b16 %v86, %v85
    %v93 = vunpack.c.l.b16 %v69
    %v94 = vunpack.c.l.b16 %v70
    %v95 = vpack.c.b16 %v94, %v93
    %vm97 = vcmask 130048
    %v99 = vsel %vm97, %v87, 0
    %v102 = vsel %vm97, %v88, 0
    %v105 = vsel %vm97, %v89, 0
    %v108 = vsel %vm97, %v90, 0
    %110 = vmatprep.subr.bf16.mxu0 0
    %111 = vmatpush1.bf16.msra.mxu0 %v95
    %112 = vmatprep.subr.bf16.mxu0 0
    %113 = vmatpush1.bf16.msra.mxu0 0
    %114 = vmatprep.subr.bf16.mxu0 0
    %115 = vmatpush1.bf16.msra.mxu0 0
    %116 = vmatprep.subr.bf16.mxu0 0
    %117 = vmatpush1.bf16.msra.mxu0 0
    %118 = vmatprep.subr.bf16.mxu0 0
    %119 = vmatpush1.bf16.msra.mxu0 0
    %120 = vmatprep.subr.bf16.mxu0 0
    %121 = vmatpush1.bf16.msra.mxu0 0
    %122 = vmatprep.subr.bf16.mxu0 0
    %123 = vmatpush1.bf16.msra.mxu0 0
    %124 = vmatprep.subr.bf16.mxu0 0
    %125 = vmatpush1.bf16.msra.mxu0 0
    %126 = vmatprep.subr.bf16.mxu0 0
    %127 = vmatpush1.bf16.msra.mxu0 0
    %128 = vmatprep.subr.bf16.mxu0 0
    %129 = vmatpush1.bf16.msra.mxu0 0
    %130 = vmatprep.subr.bf16.mxu0 0
    %131 = vmatpush1.bf16.msra.mxu0 0
    %132 = vmatprep.subr.bf16.mxu0 0
    %133 = vmatpush1.bf16.msra.mxu0 0
    %134 = vmatprep.subr.bf16.mxu0 0
    %135 = vmatpush1.bf16.msra.mxu0 0
    %136 = vmatprep.subr.bf16.mxu0 0
    %137 = vmatpush1.bf16.msra.mxu0 0
    %138 = vmatprep.subr.bf16.mxu0 0
    %139 = vmatpush1.bf16.msra.mxu0 0
    %140 = vmatprep.subr.bf16.mxu0 0
    %141 = vmatpush1.bf16.msra.mxu0 0
    %142 = vmatprep.mubr.bf16.mxu0 0
    %143 = vmatmul.mubr.bf16.gmra.mrb[0].mxu0 %v99
    %v144 = vpop.f32.mrb[0].mxu0
    %v145 = vadd.f32 0.0, %v144
    %v146 = vpop.f32.mrb[0].mxu0
    %v147 = vpop.f32.mrb[0].mxu0
    %v148 = vadd.f32 0.0, %v147
    %v149 = vpop.f32.mrb[0].mxu0
    %150 = vmatprep.mubr.bf16.mxu0 0
    %151 = vmatmul.mubr.bf16.gmra.mrb[0].mxu0 %v102
    %v152 = vpop.f32.mrb[0].mxu0
    %v153 = vadd.f32 0.0, %v152
    %v154 = vpop.f32.mrb[0].mxu0
    %v155 = vpop.f32.mrb[0].mxu0
    %v156 = vadd.f32 0.0, %v155
    %v157 = vpop.f32.mrb[0].mxu0
    %158 = vmatprep.mubr.bf16.mxu0 0
    %159 = vmatmul.mubr.bf16.gmra.mrb[0].mxu0 %v105
    %v160 = vpop.f32.mrb[0].mxu0
    %v161 = vadd.f32 0.0, %v160
    %v162 = vpop.f32.mrb[0].mxu0
    %v163 = vpop.f32.mrb[0].mxu0
    %v164 = vadd.f32 0.0, %v163
    %v165 = vpop.f32.mrb[0].mxu0
    %166 = vmatprep.mubr.bf16.mxu0 0
    %167 = vmatmul.mubr.bf16.gmra.mrb[0].mxu0 %v108
    %v168 = vpop.f32.mrb[0].mxu0
    %v169 = vadd.f32 0.0, %v168
    %v170 = vpop.f32.mrb[0].mxu0
    %v171 = vpop.f32.mrb[0].mxu0
    %v172 = vadd.f32 0.0, %v171
    %v173 = vpop.f32.mrb[0].mxu0
    %174 = vdwg.mxu0
    %v175 = vmax.f32 %v145, 0.0
    %v176 = vmax.f32 %v148, 0.0
    %v177 = vmax.f32 %v153, 0.0
    %v178 = vmax.f32 %v156, 0.0
    %v179 = vmax.f32 %v161, 0.0
    %v180 = vmax.f32 %v164, 0.0
    %v181 = vmax.f32 %v169, 0.0
    %v182 = vmax.f32 %v172, 0.0
    %v183 = vpack.c.bf16 %v176, %v175
    %v184 = vpack.c.bf16 %v178, %v177
    %v185 = vpack.c.bf16 %v180, %v179
    %v186 = vpack.c.bf16 %v182, %v181
    %v187 = vld [vmem:[%s2] sm:$0xff]
    %v188 = vld [vmem:[%s2 + $0x8] sm:$0xff]
    %v189 = vld [vmem:[%s2 + $0x10] sm:$0xff]
    %v190 = vld [vmem:[%s2 + $0x18] sm:$0xff]
    %v191 = vld [vmem:[%s2 + $0x20] sm:$0xff]
    %v192 = vld [vmem:[%s2 + $0x28] sm:$0xff]
    %v193 = vld [vmem:[%s2 + $0x30] sm:$0xff]
    %v194 = vld [vmem:[%s2 + $0x38] sm:$0xff]
    %v203 = vunpack.c.l.b16 %v187
    %v204 = vunpack.c.h.b16 %v187
    %v205 = vunpack.c.l.b16 %v188
    %v206 = vunpack.c.h.b16 %v188
    %v207 = vunpack.c.l.b16 %v189
    %v208 = vunpack.c.h.b16 %v189
    %v209 = vunpack.c.l.b16 %v190
    %v210 = vunpack.c.h.b16 %v190
    %v211 = vunpack.c.l.b16 %v191
    %v212 = vunpack.c.h.b16 %v191
    %v213 = vunpack.c.l.b16 %v192
    %v214 = vunpack.c.h.b16 %v192
    %v215 = vunpack.c.l.b16 %v193
    %v216 = vunpack.c.h.b16 %v193
    %v217 = vunpack.c.l.b16 %v194
    %v218 = vunpack.c.h.b16 %v194
    %v219 = vpack.c.b16 %v205, %v203
    %v220 = vpack.c.b16 %v206, %v204
    %v221 = vpack.c.b16 %v209, %v207
    %v222 = vpack.c.b16 %v210, %v208
    %v223 = vpack.c.b16 %v213, %v211
    %v224 = vpack.c.b16 %v214, %v212
    %v225 = vpack.c.b16 %v217, %v215
    %v226 = vpack.c.b16 %v218, %v216
    %vm235 = vcmask 523264
    %v237 = vsel %vm235, %v183, 0
    %v240 = vsel %vm235, %v184, 0
    %v243 = vsel %vm235, %v185, 0
    %v246 = vsel %vm235, %v186, 0
    %248 = vmatprep.subr.bf16.mxu0 %v220
    %249 = vmatpush1.bf16.msra.mxu0 %v219
    %250 = vmatprep.subr.bf16.mxu0 %v222
    %251 = vmatpush1.bf16.msra.mxu0 %v221
    %252 = vmatprep.subr.bf16.mxu0 %v224
    %253 = vmatpush1.bf16.msra.mxu0 %v223
    %254 = vmatprep.subr.bf16.mxu0 %v226
    %255 = vmatpush1.bf16.msra.mxu0 %v225
    %256 = vmatprep.subr.bf16.mxu0 0
    %257 = vmatpush1.bf16.msra.mxu0 0
    %258 = vmatprep.subr.bf16.mxu0 0
    %259 = vmatpush1.bf16.msra.mxu0 0
    %260 = vmatprep.subr.bf16.mxu0 0
    %261 = vmatpush1.bf16.msra.mxu0 0
    %262 = vmatprep.subr.bf16.mxu0 0
    %263 = vmatpush1.bf16.msra.mxu0 0
    %264 = vmatprep.subr.bf16.mxu0 0
    %265 = vmatpush1.bf16.msra.mxu0 0
    %266 = vmatprep.subr.bf16.mxu0 0
    %267 = vmatpush1.bf16.msra.mxu0 0
    %268 = vmatprep.subr.bf16.mxu0 0
    %269 = vmatpush1.bf16.msra.mxu0 0
    %270 = vmatprep.subr.bf16.mxu0 0
    %271 = vmatpush1.bf16.msra.mxu0 0
    %272 = vmatprep.subr.bf16.mxu0 0
    %273 = vmatpush1.bf16.msra.mxu0 0
    %274 = vmatprep.subr.bf16.mxu0 0
    %275 = vmatpush1.bf16.msra.mxu0 0
    %276 = vmatprep.subr.bf16.mxu0 0
    %277 = vmatpush1.bf16.msra.mxu0 0
    %278 = vmatprep.subr.bf16.mxu0 0
    %279 = vmatpush1.bf16.msra.mxu0 0
    %280 = vmatprep.mubr.bf16.mxu0 0
    %281 = vmatmul.mubr.bf16.gmra.mrb[0].mxu0 %v237
    %v282 = vpop.f32.mrb[0].mxu0
    %v283 = vadd.f32 0.0, %v282
    %v284 = vpop.f32.mrb[0].mxu0
    %v285 = vadd.f32 0.0, %v284
    %v286 = vpop.f32.mrb[0].mxu0
    %v287 = vadd.f32 0.0, %v286
    %v288 = vpop.f32.mrb[0].mxu0
    %v289 = vadd.f32 0.0, %v288
    %290 = vmatprep.mubr.bf16.mxu0 0
    %291 = vmatmul.mubr.bf16.gmra.mrb[0].mxu0 %v240
    %v292 = vpop.f32.mrb[0].mxu0
    %v293 = vadd.f32 0.0, %v292
    %v294 = vpop.f32.mrb[0].mxu0
    %v295 = vadd.f32 0.0, %v294
    %v296 = vpop.f32.mrb[0].mxu0
    %v297 = vadd.f32 0.0, %v296
    %v298 = vpop.f32.mrb[0].mxu0
    %v299 = vadd.f32 0.0, %v298
    %300 = vmatprep.mubr.bf16.mxu0 0
    %301 = vmatmul.mubr.bf16.gmra.mrb[0].mxu0 %v243
    %v302 = vpop.f32.mrb[0].mxu0
    %v303 = vadd.f32 0.0, %v302
    %v304 = vpop.f32.mrb[0].mxu0
    %v305 = vadd.f32 0.0, %v304
    %v306 = vpop.f32.mrb[0].mxu0
    %v307 = vadd.f32 0.0, %v306
    %v308 = vpop.f32.mrb[0].mxu0
    %v309 = vadd.f32 0.0, %v308
    %310 = vmatprep.mubr.bf16.mxu0 0
    %311 = vmatmul.mubr.bf16.gmra.mrb[0].mxu0 %v246
    %v312 = vpop.f32.mrb[0].mxu0
    %v313 = vadd.f32 0.0, %v312
    %v314 = vpop.f32.mrb[0].mxu0
    %v315 = vadd.f32 0.0, %v314
    %v316 = vpop.f32.mrb[0].mxu0
    %v317 = vadd.f32 0.0, %v316
    %v318 = vpop.f32.mrb[0].mxu0
    %v319 = vadd.f32 0.0, %v318
    %320 = vdwg.mxu0
    %v321 = vld [vmem:[%s3] sm:$0xf]
    %v322 = vld [vmem:[%s3 + $0x4] sm:$0xf]
    %v323 = vld [vmem:[%s3 + $0x8] sm:$0xf]
    %v324 = vld [vmem:[%s3 + $0xc] sm:$0xf]
    %v325 = vld [vmem:[%s3 + $0x10] sm:$0xf]
    %v326 = vld [vmem:[%s3 + $0x14] sm:$0xf]
    %v327 = vld [vmem:[%s3 + $0x18] sm:$0xf]
    %v328 = vld [vmem:[%s3 + $0x1c] sm:$0xf]
    %v329 = vld [vmem:[%s4] sm:$0xf]
    %v330 = vld [vmem:[%s4 + $0x4] sm:$0xf]
    %v331 = vld [vmem:[%s4 + $0x8] sm:$0xf]
    %v332 = vld [vmem:[%s4 + $0xc] sm:$0xf]
    %v333 = vld [vmem:[%s4 + $0x10] sm:$0xf]
    %v334 = vld [vmem:[%s4 + $0x14] sm:$0xf]
    %v335 = vld [vmem:[%s4 + $0x18] sm:$0xf]
    %v336 = vld [vmem:[%s4 + $0x1c] sm:$0xf]
    %s337 = sld [smem:[#allocation2]]
    %s338 = sld [smem:[#allocation2 + $0x1]]
    %s339 = sld [smem:[#allocation2 + $0x2]]
    %s340 = sld [smem:[#allocation4]]
    %s341 = sld [smem:[#allocation4 + $0x1]]
    %s342 = sld [smem:[#allocation4 + $0x2]]
    %v343 = vstv %s337
    %v344 = vmul.f32 %v343, %v283
    %v345 = vmul.f32 %v343, %v287
    %v346 = vmul.f32 %v343, %v293
    %v347 = vmul.f32 %v343, %v297
    %v348 = vmul.f32 %v343, %v303
    %v349 = vmul.f32 %v343, %v307
    %v350 = vmul.f32 %v343, %v313
    %v351 = vmul.f32 %v343, %v317
    %v352 = vpack.c.bf16 %v289, %v285
    %v353 = vpack.c.bf16 %v299, %v295
    %v354 = vpack.c.bf16 %v309, %v305
    %v355 = vpack.c.bf16 %v319, %v315
    %v364 = vunpack.c.l.b16 %v329
    %v365 = vunpack.c.l.b16 %v330
    %v366 = vunpack.c.l.b16 %v331
    %v367 = vunpack.c.l.b16 %v332
    %v368 = vunpack.c.l.b16 %v333
    %v369 = vunpack.c.l.b16 %v334
    %v370 = vunpack.c.l.b16 %v335
    %v371 = vunpack.c.l.b16 %v336
    %v372 = vpack.c.b16 %v365, %v364
    %v373 = vpack.c.b16 %v367, %v366
    %v374 = vpack.c.b16 %v369, %v368
    %v375 = vpack.c.b16 %v371, %v370
    %v377 = vsel %vm235, %v372, 0
    %v380 = vsel %vm235, %v373, 0
    %v383 = vsel %vm235, %v374, 0
    %v386 = vsel %vm235, %v375, 0
    %388 = vmatprep.subr.bf16.mxu0 0
    %389 = vmatpush1.bf16.msra.mxu0 %v352
    %390 = vmatprep.subr.bf16.mxu0 0
    %391 = vmatpush1.bf16.msra.mxu0 %v353
    %392 = vmatprep.subr.bf16.mxu0 0
    %393 = vmatpush1.bf16.msra.mxu0 %v354
    %394 = vmatprep.subr.bf16.mxu0 0
    %395 = vmatpush1.bf16.msra.mxu0 %v355
    %396 = vmatprep.subr.bf16.mxu0 0
    %397 = vmatpush1.bf16.msra.mxu0 0
    %398 = vmatprep.subr.bf16.mxu0 0
    %399 = vmatpush1.bf16.msra.mxu0 0
    %400 = vmatprep.subr.bf16.mxu0 0
    %401 = vmatpush1.bf16.msra.mxu0 0
    %402 = vmatprep.subr.bf16.mxu0 0
    %403 = vmatpush1.bf16.msra.mxu0 0
    %404 = vmatprep.subr.bf16.mxu0 0
    %405 = vmatpush1.bf16.msra.mxu0 0
    %406 = vmatprep.subr.bf16.mxu0 0
    %407 = vmatpush1.bf16.msra.mxu0 0
    %408 = vmatprep.subr.bf16.mxu0 0
    %409 = vmatpush1.bf16.msra.mxu0 0
    %410 = vmatprep.subr.bf16.mxu0 0
    %411 = vmatpush1.bf16.msra.mxu0 0
    %412 = vmatprep.subr.bf16.mxu0 0
    %413 = vmatpush1.bf16.msra.mxu0 0
    %414 = vmatprep.subr.bf16.mxu0 0
    %415 = vmatpush1.bf16.msra.mxu0 0
    %416 = vmatprep.subr.bf16.mxu0 0
    %417 = vmatpush1.bf16.msra.mxu0 0
    %418 = vmatprep.subr.bf16.mxu0 0
    %419 = vmatpush1.bf16.msra.mxu0 0
    %420 = vmatprep.mubr.bf16.mxu0 0
    %421 = vmatmul.mubr.bf16.gmra.mrb[0].mxu0 %v377
    %v422 = vpop.f32.mrb[0].mxu0
    %v423 = vadd.f32 0.0, %v422
    %v424 = vpop.f32.mrb[0].mxu0
    %v425 = vpop.f32.mrb[0].mxu0
    %v426 = vadd.f32 0.0, %v425
    %v427 = vpop.f32.mrb[0].mxu0
    %428 = vmatprep.mubr.bf16.mxu0 0
    %429 = vmatmul.mubr.bf16.gmra.mrb[0].mxu0 %v380
    %v430 = vpop.f32.mrb[0].mxu0
    %v431 = vadd.f32 0.0, %v430
    %v432 = vpop.f32.mrb[0].mxu0
    %v433 = vpop.f32.mrb[0].mxu0
    %v434 = vadd.f32 0.0, %v433
    %v435 = vpop.f32.mrb[0].mxu0
    %436 = vmatprep.mubr.bf16.mxu0 0
    %437 = vmatmul.mubr.bf16.gmra.mrb[0].mxu0 %v383
    %v438 = vpop.f32.mrb[0].mxu0
    %v439 = vadd.f32 0.0, %v438
    %v440 = vpop.f32.mrb[0].mxu0
    %v441 = vpop.f32.mrb[0].mxu0
    %v442 = vadd.f32 0.0, %v441
    %v443 = vpop.f32.mrb[0].mxu0
    %444 = vmatprep.mubr.bf16.mxu0 0
    %445 = vmatmul.mubr.bf16.gmra.mrb[0].mxu0 %v386
    %v446 = vpop.f32.mrb[0].mxu0
    %v447 = vadd.f32 0.0, %v446
    %v448 = vpop.f32.mrb[0].mxu0
    %v449 = vpop.f32.mrb[0].mxu0
    %v450 = vadd.f32 0.0, %v449
    %v451 = vpop.f32.mrb[0].mxu0
    %452 = vdwg.mxu0
    %v453 = vstv %s340
    %v454 = vmul.f32 %v453, %v423
    %v455 = vmul.f32 %v453, %v426
    %v456 = vmul.f32 %v453, %v431
    %v457 = vmul.f32 %v453, %v434
    %v458 = vmul.f32 %v453, %v439
    %v459 = vmul.f32 %v453, %v442
    %v460 = vmul.f32 %v453, %v447
    %v461 = vmul.f32 %v453, %v450
    %v462 = vadd.f32 %v454, 0.0
    %v463 = vadd.f32 %v455, 0.0
    %v464 = vadd.f32 %v456, 0.0
    %v465 = vadd.f32 %v457, 0.0
    %v466 = vadd.f32 %v458, 0.0
    %v467 = vadd.f32 %v459, 0.0
    %v468 = vadd.f32 %v460, 0.0
    %v469 = vadd.f32 %v461, 0.0
    %v470 = vpack.c.bf16 %v426, %v423
    %v471 = vpack.c.bf16 %v434, %v431
    %v472 = vpack.c.bf16 %v442, %v439
    %v473 = vpack.c.bf16 %v450, %v447
    %v482 = vunpack.c.l.b16 %v321
    %v483 = vunpack.c.l.b16 %v322
    %v484 = vunpack.c.l.b16 %v323
    %v485 = vunpack.c.l.b16 %v324
    %v486 = vunpack.c.l.b16 %v325
    %v487 = vunpack.c.l.b16 %v326
    %v488 = vunpack.c.l.b16 %v327
    %v489 = vunpack.c.l.b16 %v328
    %v490 = vpack.c.b16 %v483, %v482
    %v491 = vpack.c.b16 %v485, %v484
    %v492 = vpack.c.b16 %v487, %v486
    %v493 = vpack.c.b16 %v489, %v488
    %v495 = vsel %vm235, %v490, 0
    %v498 = vsel %vm235, %v491, 0
    %v501 = vsel %vm235, %v492, 0
    %v504 = vsel %vm235, %v493, 0
    %506 = vmatprep.subr.bf16.mxu0 0
    %507 = vmatpush1.bf16.msra.mxu0 %v470
    %508 = vmatprep.subr.bf16.mxu0 0
    %509 = vmatpush1.bf16.msra.mxu0 %v471
    %510 = vmatprep.subr.bf16.mxu0 0
    %511 = vmatpush1.bf16.msra.mxu0 %v472
    %512 = vmatprep.subr.bf16.mxu0 0
    %513 = vmatpush1.bf16.msra.mxu0 %v473
    %514 = vmatprep.subr.bf16.mxu0 0
    %515 = vmatpush1.bf16.msra.mxu0 0
    %516 = vmatprep.subr.bf16.mxu0 0
    %517 = vmatpush1.bf16.msra.mxu0 0
    %518 = vmatprep.subr.bf16.mxu0 0
    %519 = vmatpush1.bf16.msra.mxu0 0
    %520 = vmatprep.subr.bf16.mxu0 0
    %521 = vmatpush1.bf16.msra.mxu0 0
    %522 = vmatprep.subr.bf16.mxu0 0
    %523 = vmatpush1.bf16.msra.mxu0 0
    %524 = vmatprep.subr.bf16.mxu0 0
    %525 = vmatpush1.bf16.msra.mxu0 0
    %526 = vmatprep.subr.bf16.mxu0 0
    %527 = vmatpush1.bf16.msra.mxu0 0
    %528 = vmatprep.subr.bf16.mxu0 0
    %529 = vmatpush1.bf16.msra.mxu0 0
    %530 = vmatprep.subr.bf16.mxu0 0
    %531 = vmatpush1.bf16.msra.mxu0 0
    %532 = vmatprep.subr.bf16.mxu0 0
    %533 = vmatpush1.bf16.msra.mxu0 0
    %534 = vmatprep.subr.bf16.mxu0 0
    %535 = vmatpush1.bf16.msra.mxu0 0
    %536 = vmatprep.subr.bf16.mxu0 0
    %537 = vmatpush1.bf16.msra.mxu0 0
    %538 = vmatprep.mubr.bf16.mxu0 0
    %539 = vmatmul.mubr.bf16.gmra.mrb[0].mxu0 %v495
    %v540 = vpop.f32.mrb[0].mxu0
    %v541 = vadd.f32 0.0, %v540
    %v542 = vpop.f32.mrb[0].mxu0
    %v543 = vpop.f32.mrb[0].mxu0
    %v544 = vadd.f32 0.0, %v543
    %v545 = vpop.f32.mrb[0].mxu0
    %546 = vmatprep.mubr.bf16.mxu0 0
    %547 = vmatmul.mubr.bf16.gmra.mrb[0].mxu0 %v498
    %v548 = vpop.f32.mrb[0].mxu0
    %v549 = vadd.f32 0.0, %v548
    %v550 = vpop.f32.mrb[0].mxu0
    %v551 = vpop.f32.mrb[0].mxu0
    %v552 = vadd.f32 0.0, %v551
    %v553 = vpop.f32.mrb[0].mxu0
    %554 = vmatprep.mubr.bf16.mxu0 0
    %555 = vmatmul.mubr.bf16.gmra.mrb[0].mxu0 %v501
    %v556 = vpop.f32.mrb[0].mxu0
    %v557 = vadd.f32 0.0, %v556
    %v558 = vpop.f32.mrb[0].mxu0
    %v559 = vpop.f32.mrb[0].mxu0
    %v560 = vadd.f32 0.0, %v559
    %v561 = vpop.f32.mrb[0].mxu0
    %562 = vmatprep.mubr.bf16.mxu0 0
    %563 = vmatmul.mubr.bf16.gmra.mrb[0].mxu0 %v504
    %v564 = vpop.f32.mrb[0].mxu0
    %v565 = vadd.f32 0.0, %v564
    %v566 = vpop.f32.mrb[0].mxu0
    %v567 = vpop.f32.mrb[0].mxu0
    %v568 = vadd.f32 0.0, %v567
    %v569 = vpop.f32.mrb[0].mxu0
    %570 = vdwg.mxu0
    %v571 = vstv %s341
    %v572 = vmul.f32 %v571, %v541
    %v573 = vmul.f32 %v571, %v544
    %v574 = vmul.f32 %v571, %v549
    %v575 = vmul.f32 %v571, %v552
    %v576 = vmul.f32 %v571, %v557
    %v577 = vmul.f32 %v571, %v560
    %v578 = vmul.f32 %v571, %v565
    %v579 = vmul.f32 %v571, %v568
    %v580 = vadd.f32 %v462, %v572
    %v581 = vadd.f32 %v463, %v573
    %v582 = vadd.f32 %v464, %v574
    %v583 = vadd.f32 %v465, %v575
    %v584 = vadd.f32 %v466, %v576
    %v585 = vadd.f32 %v467, %v577
    %v586 = vadd.f32 %v468, %v578
    %v587 = vadd.f32 %v469, %v579
    %v588 = vpack.c.bf16 %v287, %v283
    %v589 = vpack.c.bf16 %v297, %v293
    %v590 = vpack.c.bf16 %v307, %v303
    %v591 = vpack.c.bf16 %v317, %v313
    %592 = vmatprep.subr.bf16.mxu0 %v352
    %593 = vmatpush1.bf16.msra.mxu0 %v588
    %594 = vmatprep.subr.bf16.mxu0 %v353
    %595 = vmatpush1.bf16.msra.mxu0 %v589
    %596 = vmatprep.subr.bf16.mxu0 %v354
    %597 = vmatpush1.bf16.msra.mxu0 %v590
    %598 = vmatprep.subr.bf16.mxu0 %v355
    %599 = vmatpush1.bf16.msra.mxu0 %v591
    %600 = vmatprep.subr.bf16.mxu0 0
    %601 = vmatpush1.bf16.msra.mxu0 0
    %602 = vmatprep.subr.bf16.mxu0 0
    %603 = vmatpush1.bf16.msra.mxu0 0
    %604 = vmatprep.subr.bf16.mxu0 0
    %605 = vmatpush1.bf16.msra.mxu0 0
    %606 = vmatprep.subr.bf16.mxu0 0
    %607 = vmatpush1.bf16.msra.mxu0 0
    %608 = vmatprep.subr.bf16.mxu0 0
    %609 = vmatpush1.bf16.msra.mxu0 0
    %610 = vmatprep.subr.bf16.mxu0 0
    %611 = vmatpush1.bf16.msra.mxu0 0
    %612 = vmatprep.subr.bf16.mxu0 0
    %613 = vmatpush1.bf16.msra.mxu0 0
    %614 = vmatprep.subr.bf16.mxu0 0
    %615 = vmatpush1.bf16.msra.mxu0 0
    %616 = vmatprep.subr.bf16.mxu0 0
    %617 = vmatpush1.bf16.msra.mxu0 0
    %618 = vmatprep.subr.bf16.mxu0 0
    %619 = vmatpush1.bf16.msra.mxu0 0
    %620 = vmatprep.subr.bf16.mxu0 0
    %621 = vmatpush1.bf16.msra.mxu0 0
    %622 = vmatprep.subr.bf16.mxu0 0
    %623 = vmatpush1.bf16.msra.mxu0 0
    %624 = vmatprep.mubr.bf16.mxu0 0
    %625 = vmatmul.mubr.bf16.gmra.mrb[0].mxu0 %v495
    %v626 = vpop.f32.mrb[0].mxu0
    %v627 = vadd.f32 0.0, %v626
    %v628 = vpop.f32.mrb[0].mxu0
    %v629 = vadd.f32 0.0, %v628
    %v630 = vpop.f32.mrb[0].mxu0
    %v631 = vadd.f32 0.0, %v630
    %v632 = vpop.f32.mrb[0].mxu0
    %v633 = vadd.f32 0.0, %v632
    %634 = vmatprep.mubr.bf16.mxu0 0
    %635 = vmatmul.mubr.bf16.gmra.mrb[0].mxu0 %v498
    %v636 = vpop.f32.mrb[0].mxu0
    %v637 = vadd.f32 0.0, %v636
    %v638 = vpop.f32.mrb[0].mxu0
    %v639 = vadd.f32 0.0, %v638
    %v640 = vpop.f32.mrb[0].mxu0
    %v641 = vadd.f32 0.0, %v640
    %v642 = vpop.f32.mrb[0].mxu0
    %v643 = vadd.f32 0.0, %v642
    %644 = vmatprep.mubr.bf16.mxu0 0
    %645 = vmatmul.mubr.bf16.gmra.mrb[0].mxu0 %v501
    %v646 = vpop.f32.mrb[0].mxu0
    %v647 = vadd.f32 0.0, %v646
    %v648 = vpop.f32.mrb[0].mxu0
    %v649 = vadd.f32 0.0, %v648
    %v650 = vpop.f32.mrb[0].mxu0
    %v651 = vadd.f32 0.0, %v650
    %v652 = vpop.f32.mrb[0].mxu0
    %v653 = vadd.f32 0.0, %v652
    %654 = vmatprep.mubr.bf16.mxu0 0
    %655 = vmatmul.mubr.bf16.gmra.mrb[0].mxu0 %v504
    %v656 = vpop.f32.mrb[0].mxu0
    %v657 = vadd.f32 0.0, %v656
    %v658 = vpop.f32.mrb[0].mxu0
    %v659 = vadd.f32 0.0, %v658
    %v660 = vpop.f32.mrb[0].mxu0
    %v661 = vadd.f32 0.0, %v660
    %v662 = vpop.f32.mrb[0].mxu0
    %v663 = vadd.f32 0.0, %v662
    %664 = vdwg.mxu0
    %v665 = vstv %s338
    %v666 = vmul.f32 %v665, %v627
    %v667 = vmul.f32 %v665, %v631
    %v668 = vmul.f32 %v665, %v637
    %v669 = vmul.f32 %v665, %v641
    %v670 = vmul.f32 %v665, %v647
    %v671 = vmul.f32 %v665, %v651
    %v672 = vmul.f32 %v665, %v657
    %v673 = vmul.f32 %v665, %v661
    %v674 = vadd.f32 %v344, %v666
    %v675 = vadd.f32 %v345, %v667
    %v676 = vadd.f32 %v346, %v668
    %v677 = vadd.f32 %v347, %v669
    %v678 = vadd.f32 %v348, %v670
    %v679 = vadd.f32 %v349, %v671
    %v680 = vadd.f32 %v350, %v672
    %v681 = vadd.f32 %v351, %v673
    %v682 = vpack.c.bf16 %v633, %v629
    %v683 = vpack.c.bf16 %v643, %v639
    %v684 = vpack.c.bf16 %v653, %v649
    %v685 = vpack.c.bf16 %v663, %v659
    %686 = vmatprep.subr.bf16.mxu0 0
    %687 = vmatpush1.bf16.msra.mxu0 %v682
    %688 = vmatprep.subr.bf16.mxu0 0
    %689 = vmatpush1.bf16.msra.mxu0 %v683
    %690 = vmatprep.subr.bf16.mxu0 0
    %691 = vmatpush1.bf16.msra.mxu0 %v684
    %692 = vmatprep.subr.bf16.mxu0 0
    %693 = vmatpush1.bf16.msra.mxu0 %v685
    %694 = vmatprep.subr.bf16.mxu0 0
    %695 = vmatpush1.bf16.msra.mxu0 0
    %696 = vmatprep.subr.bf16.mxu0 0
    %697 = vmatpush1.bf16.msra.mxu0 0
    %698 = vmatprep.subr.bf16.mxu0 0
    %699 = vmatpush1.bf16.msra.mxu0 0
    %700 = vmatprep.subr.bf16.mxu0 0
    %701 = vmatpush1.bf16.msra.mxu0 0
    %702 = vmatprep.subr.bf16.mxu0 0
    %703 = vmatpush1.bf16.msra.mxu0 0
    %704 = vmatprep.subr.bf16.mxu0 0
    %705 = vmatpush1.bf16.msra.mxu0 0
    %706 = vmatprep.subr.bf16.mxu0 0
    %707 = vmatpush1.bf16.msra.mxu0 0
    %708 = vmatprep.subr.bf16.mxu0 0
    %709 = vmatpush1.bf16.msra.mxu0 0
    %710 = vmatprep.subr.bf16.mxu0 0
    %711 = vmatpush1.bf16.msra.mxu0 0
    %712 = vmatprep.subr.bf16.mxu0 0
    %713 = vmatpush1.bf16.msra.mxu0 0
    %714 = vmatprep.subr.bf16.mxu0 0
    %715 = vmatpush1.bf16.msra.mxu0 0
    %716 = vmatprep.subr.bf16.mxu0 0
    %717 = vmatpush1.bf16.msra.mxu0 0
    %718 = vmatprep.mubr.bf16.mxu0 0
    %719 = vmatmul.mubr.bf16.gmra.mrb[0].mxu0 %v377
    %v720 = vpop.f32.mrb[0].mxu0
    %v721 = vadd.f32 0.0, %v720
    %v722 = vpop.f32.mrb[0].mxu0
    %v723 = vpop.f32.mrb[0].mxu0
    %v724 = vadd.f32 0.0, %v723
    %v725 = vpop.f32.mrb[0].mxu0
    %726 = vmatprep.mubr.bf16.mxu0 0
    %727 = vmatmul.mubr.bf16.gmra.mrb[0].mxu0 %v380
    %v728 = vpop.f32.mrb[0].mxu0
    %v729 = vadd.f32 0.0, %v728
    %v730 = vpop.f32.mrb[0].mxu0
    %v731 = vpop.f32.mrb[0].mxu0
    %v732 = vadd.f32 0.0, %v731
    %v733 = vpop.f32.mrb[0].mxu0
    %734 = vmatprep.mubr.bf16.mxu0 0
    %735 = vmatmul.mubr.bf16.gmra.mrb[0].mxu0 %v383
    %v736 = vpop.f32.mrb[0].mxu0
    %v737 = vadd.f32 0.0, %v736
    %v738 = vpop.f32.mrb[0].mxu0
    %v739 = vpop.f32.mrb[0].mxu0
    %v740 = vadd.f32 0.0, %v739
    %v741 = vpop.f32.mrb[0].mxu0
    %742 = vmatprep.mubr.bf16.mxu0 0
    %743 = vmatmul.mubr.bf16.gmra.mrb[0].mxu0 %v386
    %v744 = vpop.f32.mrb[0].mxu0
    %v745 = vadd.f32 0.0, %v744
    %v746 = vpop.f32.mrb[0].mxu0
    %v747 = vpop.f32.mrb[0].mxu0
    %v748 = vadd.f32 0.0, %v747
    %v749 = vpop.f32.mrb[0].mxu0
    %750 = vdwg.mxu0
    %v751 = vstv %s342
    %v752 = vmul.f32 %v751, %v721
    %v753 = vmul.f32 %v751, %v724
    %v754 = vmul.f32 %v751, %v729
    %v755 = vmul.f32 %v751, %v732
    %v756 = vmul.f32 %v751, %v737
    %v757 = vmul.f32 %v751, %v740
    %v758 = vmul.f32 %v751, %v745
    %v759 = vmul.f32 %v751, %v748
    %v760 = vadd.f32 %v580, %v752
    %v761 = vadd.f32 %v581, %v753
    %v762 = vadd.f32 %v582, %v754
    %v763 = vadd.f32 %v583, %v755
    %v764 = vadd.f32 %v584, %v756
    %v765 = vadd.f32 %v585, %v757
    %v766 = vadd.f32 %v586, %v758
    %v767 = vadd.f32 %v587, %v759
    %v768 = vpack.c.bf16 %v631, %v627
    %v769 = vpack.c.bf16 %v641, %v637
    %v770 = vpack.c.bf16 %v651, %v647
    %v771 = vpack.c.bf16 %v661, %v657
    %772 = vmatprep.subr.bf16.mxu0 0
    %773 = vmatpush1.bf16.msra.mxu0 %v768
    %774 = vmatprep.subr.bf16.mxu0 0
    %775 = vmatpush1.bf16.msra.mxu0 %v769
    %776 = vmatprep.subr.bf16.mxu0 0
    %777 = vmatpush1.bf16.msra.mxu0 %v770
    %778 = vmatprep.subr.bf16.mxu0 0
    %779 = vmatpush1.bf16.msra.mxu0 %v771
    %780 = vmatprep.subr.bf16.mxu0 0
    %781 = vmatpush1.bf16.msra.mxu0 0
    %782 = vmatprep.subr.bf16.mxu0 0
    %783 = vmatpush1.bf16.msra.mxu0 0
    %784 = vmatprep.subr.bf16.mxu0 0
    %785 = vmatpush1.bf16.msra.mxu0 0
    %786 = vmatprep.subr.bf16.mxu0 0
    %787 = vmatpush1.bf16.msra.mxu0 0
    %788 = vmatprep.subr.bf16.mxu0 0
    %789 = vmatpush1.bf16.msra.mxu0 0
    %790 = vmatprep.subr.bf16.mxu0 0
    %791 = vmatpush1.bf16.msra.mxu0 0
    %792 = vmatprep.subr.bf16.mxu0 0
    %793 = vmatpush1.bf16.msra.mxu0 0
    %794 = vmatprep.subr.bf16.mxu0 0
    %795 = vmatpush1.bf16.msra.mxu0 0
    %796 = vmatprep.subr.bf16.mxu0 0
    %797 = vmatpush1.bf16.msra.mxu0 0
    %798 = vmatprep.subr.bf16.mxu0 0
    %799 = vmatpush1.bf16.msra.mxu0 0
    %800 = vmatprep.subr.bf16.mxu0 0
    %801 = vmatpush1.bf16.msra.mxu0 0
    %802 = vmatprep.subr.bf16.mxu0 0
    %803 = vmatpush1.bf16.msra.mxu0 0
    %804 = vmatprep.mubr.bf16.mxu0 0
    %805 = vmatmul.mubr.bf16.gmra.mrb[0].mxu0 %v495
    %v806 = vpop.f32.mrb[0].mxu0
    %v807 = vadd.f32 0.0, %v806
    %v808 = vpop.f32.mrb[0].mxu0
    %v809 = vpop.f32.mrb[0].mxu0
    %v810 = vadd.f32 0.0, %v809
    %v811 = vpop.f32.mrb[0].mxu0
    %812 = vmatprep.mubr.bf16.mxu0 0
    %813 = vmatmul.mubr.bf16.gmra.mrb[0].mxu0 %v498
    %v814 = vpop.f32.mrb[0].mxu0
    %v815 = vadd.f32 0.0, %v814
    %v816 = vpop.f32.mrb[0].mxu0
    %v817 = vpop.f32.mrb[0].mxu0
    %v818 = vadd.f32 0.0, %v817
    %v819 = vpop.f32.mrb[0].mxu0
    %820 = vmatprep.mubr.bf16.mxu0 0
    %821 = vmatmul.mubr.bf16.gmra.mrb[0].mxu0 %v501
    %v822 = vpop.f32.mrb[0].mxu0
    %v823 = vadd.f32 0.0, %v822
    %v824 = vpop.f32.mrb[0].mxu0
    %v825 = vpop.f32.mrb[0].mxu0
    %v826 = vadd.f32 0.0, %v825
    %v827 = vpop.f32.mrb[0].mxu0
    %828 = vmatprep.mubr.bf16.mxu0 0
    %829 = vmatmul.mubr.bf16.gmra.mrb[0].mxu0 %v504
    %v830 = vpop.f32.mrb[0].mxu0
    %v831 = vadd.f32 0.0, %v830
    %v832 = vpop.f32.mrb[0].mxu0
    %v833 = vpop.f32.mrb[0].mxu0
    %v834 = vadd.f32 0.0, %v833
    %v835 = vpop.f32.mrb[0].mxu0
    %836 = vdwg.mxu0
    %v837 = vstv %s339
    %v838 = vmul.f32 %v837, %v807
    %v839 = vmul.f32 %v837, %v810
    %v840 = vmul.f32 %v837, %v815
    %v841 = vmul.f32 %v837, %v818
    %v842 = vmul.f32 %v837, %v823
    %v843 = vmul.f32 %v837, %v826
    %v844 = vmul.f32 %v837, %v831
    %v845 = vmul.f32 %v837, %v834
    %v846 = vadd.f32 %v674, %v838
    %v847 = vadd.f32 %v675, %v839
    %v848 = vadd.f32 %v676, %v840
    %v849 = vadd.f32 %v677, %v841
    %v850 = vadd.f32 %v678, %v842
    %v851 = vadd.f32 %v679, %v843
    %v852 = vadd.f32 %v680, %v844
    %v853 = vadd.f32 %v681, %v845
    %v854 = vld [vmem:[%s5] sm:$0xff]
    %v855 = vld [vmem:[%s5 + $0x8] sm:$0xff]
    %v856 = vld [vmem:[%s5 + $0x10] sm:$0xff]
    %v857 = vld [vmem:[%s5 + $0x18] sm:$0xff]
    %v858 = vld [vmem:[%s5 + $0x20] sm:$0xff]
    %v859 = vld [vmem:[%s5 + $0x28] sm:$0xff]
    %v860 = vld [vmem:[%s5 + $0x30] sm:$0xff]
    %v861 = vld [vmem:[%s5 + $0x38] sm:$0xff]
    %v862 = vld [vmem:[%s5 + $0x40] sm:$0xff]
    %v863 = vld [vmem:[%s5 + $0x48] sm:$0xff]
    %v864 = vld [vmem:[%s5 + $0x50] sm:$0xff]
    %v865 = vld [vmem:[%s5 + $0x58] sm:$0xff]
    %v866 = vld [vmem:[%s5 + $0x60] sm:$0xff]
    %v867 = vld [vmem:[%s5 + $0x68] sm:$0xff]
    %v868 = vld [vmem:[%s5 + $0x70] sm:$0xff]
    %v869 = vld [vmem:[%s5 + $0x78] sm:$0xff]
    %v870 = vld [vmem:[%s5 + $0x80] sm:$0xff]
    %v871 = vld [vmem:[%s5 + $0x88] sm:$0xff]
    %v872 = vld [vmem:[%s5 + $0x90] sm:$0xff]
    %v873 = vld [vmem:[%s5 + $0x98] sm:$0xff]
    %v874 = vld [vmem:[%s5 + $0xa0] sm:$0xff]
    %v875 = vld [vmem:[%s5 + $0xa8] sm:$0xff]
    %v876 = vld [vmem:[%s5 + $0xb0] sm:$0xff]
    %v877 = vld [vmem:[%s5 + $0xb8] sm:$0xff]
    %v878 = vld [vmem:[%s5 + $0xc0] sm:$0xff]
    %v879 = vld [vmem:[%s5 + $0xc8] sm:$0xff]
    %v880 = vld [vmem:[%s5 + $0xd0] sm:$0xff]
    %v881 = vld [vmem:[%s5 + $0xd8] sm:$0xff]
    %v882 = vld [vmem:[%s5 + $0xe0] sm:$0xff]
    %v883 = vld [vmem:[%s5 + $0xe8] sm:$0xff]
    %v884 = vld [vmem:[%s5 + $0xf0] sm:$0xff]
    %v885 = vld [vmem:[%s5 + $0xf8] sm:$0xff]
    %v886 = vld [vmem:[%s6] sm:$0x1]
    %v888 = vlaneseq
    %v889 = vshrl.u32 %v888, 7
    %v890 = vsub.s32 0, %v889
    %v891 = vrot.slane %v886, %v890
    %893 = vmatprep.subr.mxu0 0.0
    %894 = vmatpush1.msra.mxu0 %v854
    %895 = vmatprep.subr.mxu0 0.0
    %896 = vmatpush1.msra.mxu0 %v855
    %897 = vmatprep.subr.mxu0 0.0
    %898 = vmatpush1.msra.mxu0 %v856
    %899 = vmatprep.subr.mxu0 0.0
    %900 = vmatpush1.msra.mxu0 %v857
    %901 = vmatprep.subr.mxu0 0.0
    %902 = vmatpush1.msra.mxu0 %v858
    %903 = vmatprep.subr.mxu0 0.0
    %904 = vmatpush1.msra.mxu0 %v859
    %905 = vmatprep.subr.mxu0 0.0
    %906 = vmatpush1.msra.mxu0 %v860
    %907 = vmatprep.subr.mxu0 0.0
    %908 = vmatpush1.msra.mxu0 %v861
    %909 = vmatprep.subr.mxu0 0.0
    %910 = vmatpush1.msra.mxu0 %v862
    %911 = vmatprep.subr.mxu0 0.0
    %912 = vmatpush1.msra.mxu0 %v863
    %913 = vmatprep.subr.mxu0 0.0
    %914 = vmatpush1.msra.mxu0 %v864
    %915 = vmatprep.subr.mxu0 0.0
    %916 = vmatpush1.msra.mxu0 %v865
    %917 = vmatprep.subr.mxu0 0.0
    %918 = vmatpush1.msra.mxu0 %v866
    %919 = vmatprep.subr.mxu0 0.0
    %920 = vmatpush1.msra.mxu0 %v867
    %921 = vmatprep.subr.mxu0 0.0
    %922 = vmatpush1.msra.mxu0 %v868
    %923 = vmatprep.subr.mxu0 0.0
    %924 = vmatpush1.msra.mxu0 %v869
    %925 = vmatprep.subr.mxu0 0.0
    %926 = vmatpush1.msra.mxu0 %v870
    %927 = vmatprep.subr.mxu0 0.0
    %928 = vmatpush1.msra.mxu0 %v871
    %929 = vmatprep.subr.mxu0 0.0
    %930 = vmatpush1.msra.mxu0 %v872
    %931 = vmatprep.subr.mxu0 0.0
    %932 = vmatpush1.msra.mxu0 %v873
    %933 = vmatprep.subr.mxu0 0.0
    %934 = vmatpush1.msra.mxu0 %v874
    %935 = vmatprep.subr.mxu0 0.0
    %936 = vmatpush1.msra.mxu0 %v875
    %937 = vmatprep.subr.mxu0 0.0
    %938 = vmatpush1.msra.mxu0 %v876
    %939 = vmatprep.subr.mxu0 0.0
    %940 = vmatpush1.msra.mxu0 %v877
    %941 = vmatprep.subr.mxu0 0.0
    %942 = vmatpush1.msra.mxu0 %v878
    %943 = vmatprep.subr.mxu0 0.0
    %944 = vmatpush1.msra.mxu0 %v879
    %945 = vmatprep.subr.mxu0 0.0
    %946 = vmatpush1.msra.mxu0 %v880
    %947 = vmatprep.subr.mxu0 0.0
    %948 = vmatpush1.msra.mxu0 %v881
    %949 = vmatprep.subr.mxu0 0.0
    %950 = vmatpush1.msra.mxu0 %v882
    %951 = vmatprep.subr.mxu0 0.0
    %952 = vmatpush1.msra.mxu0 %v883
    %953 = vmatprep.subr.mxu0 0.0
    %954 = vmatpush1.msra.mxu0 %v884
    %955 = vmatprep.subr.mxu0 0.0
    %956 = vmatpush1.msra.mxu0 %v885
    %957 = vmatprep.mubr.f32.mxu0 %v760
    %958 = vmatmul.mubr.f32.gmra.mrb[0].mxu0 %v846
    %v959 = vpop.f32.mrb[0].mxu0
    %v960 = vadd.f32 %v891, %v959
    %v961 = vpop.f32.mrb[0].mxu0
    %962 = vmatprep.mubr.f32.mxu0 %v761
    %963 = vmatmul.mubr.f32.gmra.mrb[0].mxu0 %v847
    %v964 = vpop.f32.mrb[0].mxu0
    %v965 = vadd.f32 %v891, %v964
    %v966 = vpop.f32.mrb[0].mxu0
    %967 = vmatprep.mubr.f32.mxu0 %v762
    %968 = vmatmul.mubr.f32.gmra.mrb[0].mxu0 %v848
    %v969 = vpop.f32.mrb[0].mxu0
    %v970 = vadd.f32 %v891, %v969
    %v971 = vpop.f32.mrb[0].mxu0
    %972 = vmatprep.mubr.f32.mxu0 %v763
    %973 = vmatmul.mubr.f32.gmra.mrb[0].mxu0 %v849
    %v974 = vpop.f32.mrb[0].mxu0
    %v975 = vadd.f32 %v891, %v974
    %v976 = vpop.f32.mrb[0].mxu0
    %977 = vmatprep.mubr.f32.mxu0 %v764
    %978 = vmatmul.mubr.f32.gmra.mrb[0].mxu0 %v850
    %v979 = vpop.f32.mrb[0].mxu0
    %v980 = vadd.f32 %v891, %v979
    %v981 = vpop.f32.mrb[0].mxu0
    %982 = vmatprep.mubr.f32.mxu0 %v765
    %983 = vmatmul.mubr.f32.gmra.mrb[0].mxu0 %v851
    %v984 = vpop.f32.mrb[0].mxu0
    %v985 = vadd.f32 %v891, %v984
    %v986 = vpop.f32.mrb[0].mxu0
    %987 = vmatprep.mubr.f32.mxu0 %v766
    %988 = vmatmul.mubr.f32.gmra.mrb[0].mxu0 %v852
    %v989 = vpop.f32.mrb[0].mxu0
    %v990 = vadd.f32 %v891, %v989
    %v991 = vpop.f32.mrb[0].mxu0
    %992 = vmatprep.mubr.f32.mxu0 %v767
    %993 = vmatmul.mubr.f32.gmra.mrb[0].mxu0 %v853
    %v994 = vpop.f32.mrb[0].mxu0
    %v995 = vadd.f32 %v891, %v994
    %v996 = vpop.f32.mrb[0].mxu0
    %997 = vdwg.mxu0
    %998 = vmax.xlane.f32.xlu0 %v960
    %v999 = vpop.xlane.xlu0 %998
    %1000 = vmax.xlane.f32.xlu0 %v965
    %v1001 = vpop.xlane.xlu0 %1000
    %1002 = vmax.xlane.f32.xlu0 %v970
    %v1003 = vpop.xlane.xlu0 %1002
    %1004 = vmax.xlane.f32.xlu0 %v975
    %v1005 = vpop.xlane.xlu0 %1004
    %1006 = vmax.xlane.f32.xlu0 %v980
    %v1007 = vpop.xlane.xlu0 %1006
    %1008 = vmax.xlane.f32.xlu0 %v985
    %v1009 = vpop.xlane.xlu0 %1008
    %1010 = vmax.xlane.f32.xlu0 %v990
    %v1011 = vpop.xlane.xlu0 %1010
    %1012 = vmax.xlane.f32.xlu0 %v995
    %v1013 = vpop.xlane.xlu0 %1012
    %v1014 = vlaneseq
    %v1015 = vand.u32 %v1014, 127
    %vm1016 = vcmp.eq.f32.partialorder %v960, %v999
    %vm1017 = vcmp.eq.f32.partialorder %v965, %v1001
    %vm1018 = vcmp.eq.f32.partialorder %v970, %v1003
    %vm1019 = vcmp.eq.f32.partialorder %v975, %v1005
    %vm1020 = vcmp.eq.f32.partialorder %v980, %v1007
    %vm1021 = vcmp.eq.f32.partialorder %v985, %v1009
    %vm1022 = vcmp.eq.f32.partialorder %v990, %v1011
    %vm1023 = vcmp.eq.f32.partialorder %v995, %v1013
    %v1024 = vsel %vm1016, %v1015, 128
    %v1025 = vsel %vm1017, %v1015, 128
    %v1026 = vsel %vm1018, %v1015, 128
    %v1027 = vsel %vm1019, %v1015, 128
    %v1028 = vsel %vm1020, %v1015, 128
    %v1029 = vsel %vm1021, %v1015, 128
    %v1030 = vsel %vm1022, %v1015, 128
    %v1031 = vsel %vm1023, %v1015, 128
    %v1032 = vand.u32 %v1024, 65535
    %v1033 = vshra.s32 %v1024, 16
    %v1034 = vcvt.s32.f32 %v1032
    %v1035 = vcvt.s32.f32 %v1033
    %1036 = vmin.xlane.f32.xlu0 %v1035
    %v1037 = vpop.xlane.xlu0 %1036
    %vm1038 = vcmp.eq.f32.partialorder %v1035, %v1037
    %v1039 = vsel %vm1038, %v1034, inf
    %1040 = vmin.xlane.f32.xlu0 %v1039
    %v1041 = vpop.xlane.xlu0 %1040
    %v1042 = vcvt.f32.s32 %v1041
    %v1043 = vcvt.f32.s32 %v1037
    %v1044 = vshll.u32 %v1043, 16
    %v1045 = vadd.s32 %v1044, %v1042
    %v1046 = vand.u32 %v1025, 65535
    %v1047 = vshra.s32 %v1025, 16
    %v1048 = vcvt.s32.f32 %v1046
    %v1049 = vcvt.s32.f32 %v1047
    %1050 = vmin.xlane.f32.xlu0 %v1049
    %v1051 = vpop.xlane.xlu0 %1050
    %vm1052 = vcmp.eq.f32.partialorder %v1049, %v1051
    %v1053 = vsel %vm1052, %v1048, inf
    %1054 = vmin.xlane.f32.xlu0 %v1053
    %v1055 = vpop.xlane.xlu0 %1054
    %v1056 = vcvt.f32.s32 %v1055
    %v1057 = vcvt.f32.s32 %v1051
    %v1058 = vshll.u32 %v1057, 16
    %v1059 = vadd.s32 %v1058, %v1056
    %v1060 = vand.u32 %v1026, 65535
    %v1061 = vshra.s32 %v1026, 16
    %v1062 = vcvt.s32.f32 %v1060
    %v1063 = vcvt.s32.f32 %v1061
    %1064 = vmin.xlane.f32.xlu0 %v1063
    %v1065 = vpop.xlane.xlu0 %1064
    %vm1066 = vcmp.eq.f32.partialorder %v1063, %v1065
    %v1067 = vsel %vm1066, %v1062, inf
    %1068 = vmin.xlane.f32.xlu0 %v1067
    %v1069 = vpop.xlane.xlu0 %1068
    %v1070 = vcvt.f32.s32 %v1069
    %v1071 = vcvt.f32.s32 %v1065
    %v1072 = vshll.u32 %v1071, 16
    %v1073 = vadd.s32 %v1072, %v1070
    %v1074 = vand.u32 %v1027, 65535
    %v1075 = vshra.s32 %v1027, 16
    %v1076 = vcvt.s32.f32 %v1074
    %v1077 = vcvt.s32.f32 %v1075
    %1078 = vmin.xlane.f32.xlu0 %v1077
    %v1079 = vpop.xlane.xlu0 %1078
    %vm1080 = vcmp.eq.f32.partialorder %v1077, %v1079
    %v1081 = vsel %vm1080, %v1076, inf
    %1082 = vmin.xlane.f32.xlu0 %v1081
    %v1083 = vpop.xlane.xlu0 %1082
    %v1084 = vcvt.f32.s32 %v1083
    %v1085 = vcvt.f32.s32 %v1079
    %v1086 = vshll.u32 %v1085, 16
    %v1087 = vadd.s32 %v1086, %v1084
    %v1088 = vand.u32 %v1028, 65535
    %v1089 = vshra.s32 %v1028, 16
    %v1090 = vcvt.s32.f32 %v1088
    %v1091 = vcvt.s32.f32 %v1089
    %1092 = vmin.xlane.f32.xlu0 %v1091
    %v1093 = vpop.xlane.xlu0 %1092
    %vm1094 = vcmp.eq.f32.partialorder %v1091, %v1093
    %v1095 = vsel %vm1094, %v1090, inf
    %1096 = vmin.xlane.f32.xlu0 %v1095
    %v1097 = vpop.xlane.xlu0 %1096
    %v1098 = vcvt.f32.s32 %v1097
    %v1099 = vcvt.f32.s32 %v1093
    %v1100 = vshll.u32 %v1099, 16
    %v1101 = vadd.s32 %v1100, %v1098
    %v1102 = vand.u32 %v1029, 65535
    %v1103 = vshra.s32 %v1029, 16
    %v1104 = vcvt.s32.f32 %v1102
    %v1105 = vcvt.s32.f32 %v1103
    %1106 = vmin.xlane.f32.xlu0 %v1105
    %v1107 = vpop.xlane.xlu0 %1106
    %vm1108 = vcmp.eq.f32.partialorder %v1105, %v1107
    %v1109 = vsel %vm1108, %v1104, inf
    %1110 = vmin.xlane.f32.xlu0 %v1109
    %v1111 = vpop.xlane.xlu0 %1110
    %v1112 = vcvt.f32.s32 %v1111
    %v1113 = vcvt.f32.s32 %v1107
    %v1114 = vshll.u32 %v1113, 16
    %v1115 = vadd.s32 %v1114, %v1112
    %v1116 = vand.u32 %v1030, 65535
    %v1117 = vshra.s32 %v1030, 16
    %v1118 = vcvt.s32.f32 %v1116
    %v1119 = vcvt.s32.f32 %v1117
    %1120 = vmin.xlane.f32.xlu0 %v1119
    %v1121 = vpop.xlane.xlu0 %1120
    %vm1122 = vcmp.eq.f32.partialorder %v1119, %v1121
    %v1123 = vsel %vm1122, %v1118, inf
    %1124 = vmin.xlane.f32.xlu0 %v1123
    %v1125 = vpop.xlane.xlu0 %1124
    %v1126 = vcvt.f32.s32 %v1125
    %v1127 = vcvt.f32.s32 %v1121
    %v1128 = vshll.u32 %v1127, 16
    %v1129 = vadd.s32 %v1128, %v1126
    %v1130 = vand.u32 %v1031, 65535
    %v1131 = vshra.s32 %v1031, 16
    %v1132 = vcvt.s32.f32 %v1130
    %v1133 = vcvt.s32.f32 %v1131
    %1134 = vmin.xlane.f32.xlu0 %v1133
    %v1135 = vpop.xlane.xlu0 %1134
    %vm1136 = vcmp.eq.f32.partialorder %v1133, %v1135
    %v1137 = vsel %vm1136, %v1132, inf
    %1138 = vmin.xlane.f32.xlu0 %v1137
    %v1139 = vpop.xlane.xlu0 %1138
    %v1140 = vcvt.f32.s32 %v1139
    %v1141 = vcvt.f32.s32 %v1135
    %v1142 = vshll.u32 %v1141, 16
    %v1143 = vadd.s32 %v1142, %v1140
    %v1144 = vsub.f32 %v960, %v999
    %v1145 = vsub.f32 %v965, %v1001
    %v1146 = vsub.f32 %v970, %v1003
    %v1147 = vsub.f32 %v975, %v1005
    %v1148 = vsub.f32 %v980, %v1007
    %v1149 = vsub.f32 %v985, %v1009
    %v1150 = vsub.f32 %v990, %v1011
    %v1151 = vsub.f32 %v995, %v1013
    %v1152 = vmul.f32 %v1144, 1.442695
    %v1153 = vpow.pop %v1152
    %v1154 = vmul.f32 %v1145, 1.442695
    %v1155 = vpow.pop %v1154
    %v1156 = vmul.f32 %v1146, 1.442695
    %v1157 = vpow.pop %v1156
    %v1158 = vmul.f32 %v1147, 1.442695
    %v1159 = vpow.pop %v1158
    %v1160 = vmul.f32 %v1148, 1.442695
    %v1161 = vpow.pop %v1160
    %v1162 = vmul.f32 %v1149, 1.442695
    %v1163 = vpow.pop %v1162
    %v1164 = vmul.f32 %v1150, 1.442695
    %v1165 = vpow.pop %v1164
    %v1166 = vmul.f32 %v1151, 1.442695
    %v1167 = vpow.pop %v1166
    %1168 = vadd.xlane.f32.xlu0 %v1153
    %v1169 = vpop.xlane.xlu0 %1168
    %1170 = vadd.xlane.f32.xlu0 %v1155
    %v1171 = vpop.xlane.xlu0 %1170
    %1172 = vadd.xlane.f32.xlu0 %v1157
    %v1173 = vpop.xlane.xlu0 %1172
    %1174 = vadd.xlane.f32.xlu0 %v1159
    %v1175 = vpop.xlane.xlu0 %1174
    %1176 = vadd.xlane.f32.xlu0 %v1161
    %v1177 = vpop.xlane.xlu0 %1176
    %1178 = vadd.xlane.f32.xlu0 %v1163
    %v1179 = vpop.xlane.xlu0 %1178
    %1180 = vadd.xlane.f32.xlu0 %v1165
    %v1181 = vpop.xlane.xlu0 %1180
    %1182 = vadd.xlane.f32.xlu0 %v1167
    %v1183 = vpop.xlane.xlu0 %1182
    %v1184 = vrcp.pop %v1169
    %v1185 = vrcp.pop %v1171
    %v1186 = vrcp.pop %v1173
    %v1187 = vrcp.pop %v1175
    %v1188 = vrcp.pop %v1177
    %v1189 = vrcp.pop %v1179
    %v1190 = vrcp.pop %v1181
    %v1191 = vrcp.pop %v1183
    %v1192 = vmul.f32 %v1153, %v1184
    %v1193 = vmul.f32 %v1155, %v1185
    %v1194 = vmul.f32 %v1157, %v1186
    %v1195 = vmul.f32 %v1159, %v1187
    %v1196 = vmul.f32 %v1161, %v1188
    %v1197 = vmul.f32 %v1163, %v1189
    %v1198 = vmul.f32 %v1165, %v1190
    %v1199 = vmul.f32 %v1167, %v1191
    %v1200 = vlog2.pop %v1169
    %v1201 = vmul.f32 %v1200, 0.6931472
    %v1202 = vlog2.pop %v1171
    %v1203 = vmul.f32 %v1202, 0.6931472
    %v1204 = vlog2.pop %v1173
    %v1205 = vmul.f32 %v1204, 0.6931472
    %v1206 = vlog2.pop %v1175
    %v1207 = vmul.f32 %v1206, 0.6931472
    %v1208 = vlog2.pop %v1177
    %v1209 = vmul.f32 %v1208, 0.6931472
    %v1210 = vlog2.pop %v1179
    %v1211 = vmul.f32 %v1210, 0.6931472
    %v1212 = vlog2.pop %v1181
    %v1213 = vmul.f32 %v1212, 0.6931472
    %v1214 = vlog2.pop %v1183
    %v1215 = vmul.f32 %v1214, 0.6931472
    %v1216 = vsub.f32 %v1144, %v1201
    %v1217 = vsub.f32 %v1145, %v1203
    %v1218 = vsub.f32 %v1146, %v1205
    %v1219 = vsub.f32 %v1147, %v1207
    %v1220 = vsub.f32 %v1148, %v1209
    %v1221 = vsub.f32 %v1149, %v1211
    %v1222 = vsub.f32 %v1150, %v1213
    %v1223 = vsub.f32 %v1151, %v1215
    %1224 = vst [vmem:[%s10] sm:$0xff] %v1216
    %1225 = vst [vmem:[%s10 + $0x8] sm:$0xff] %v1217
    %1226 = vst [vmem:[%s10 + $0x10] sm:$0xff] %v1218
    %1227 = vst [vmem:[%s10 + $0x18] sm:$0xff] %v1219
    %1228 = vst [vmem:[%s10 + $0x20] sm:$0xff] %v1220
    %1229 = vst [vmem:[%s10 + $0x28] sm:$0xff] %v1221
    %1230 = vst [vmem:[%s10 + $0x30] sm:$0xff] %v1222
    %1231 = vst [vmem:[%s10 + $0x38] sm:$0xff] %v1223
    %vm1232 = vcmp.eq.s32.totalorder %v1015, 4
    %v1233 = vcvt.s32.f32 %v1045
    %v1234 = vcvt.s32.f32 %v1059
    %v1235 = vcvt.s32.f32 %v1073
    %v1236 = vcvt.s32.f32 %v1087
    %v1237 = vcvt.s32.f32 %v1101
    %v1238 = vcvt.s32.f32 %v1115
    %v1239 = vcvt.s32.f32 %v1129
    %v1240 = vcvt.s32.f32 %v1143
    %v1241 = vsel %vm1232, %v1233, %v1192
    %v1242 = vsel %vm1232, %v1234, %v1193
    %v1243 = vsel %vm1232, %v1235, %v1194
    %v1244 = vsel %vm1232, %v1236, %v1195
    %v1245 = vsel %vm1232, %v1237, %v1196
    %v1246 = vsel %vm1232, %v1238, %v1197
    %v1247 = vsel %vm1232, %v1239, %v1198
    %v1248 = vsel %vm1232, %v1240, %v1199
    %1249 = vst [vmem:[%s11] sm:$0xff] %v1241
    %1250 = vst [vmem:[%s11 + $0x8] sm:$0xff] %v1242
    %1251 = vst [vmem:[%s11 + $0x10] sm:$0xff] %v1243
    %1252 = vst [vmem:[%s11 + $0x18] sm:$0xff] %v1244
    %1253 = vst [vmem:[%s11 + $0x20] sm:$0xff] %v1245
    %1254 = vst [vmem:[%s11 + $0x28] sm:$0xff] %v1246
    %1255 = vst [vmem:[%s11 + $0x30] sm:$0xff] %v1247
    %1256 = vst [vmem:[%s11 + $0x38] sm:$0xff] %v1248
    %v1257 = vmul.f32 %v846, %v846
    %v1258 = vmul.f32 %v760, %v760
    %v1259 = vmul.f32 %v847, %v847
    %v1260 = vmul.f32 %v761, %v761
    %v1261 = vmul.f32 %v848, %v848
    %v1262 = vmul.f32 %v762, %v762
    %v1263 = vmul.f32 %v849, %v849
    %v1264 = vmul.f32 %v763, %v763
    %v1265 = vmul.f32 %v850, %v850
    %v1266 = vmul.f32 %v764, %v764
    %v1267 = vmul.f32 %v851, %v851
    %v1268 = vmul.f32 %v765, %v765
    %v1269 = vmul.f32 %v852, %v852
    %v1270 = vmul.f32 %v766, %v766
    %v1271 = vmul.f32 %v853, %v853
    %v1272 = vmul.f32 %v767, %v767
    %v1273 = vadd.f32 %v1257, %v1258
    %1274 = vadd.xlane.f32.xlu0 %v1273
    %v1275 = vpop.xlane.xlu0 %1274
    %v1276 = vadd.f32 %v1259, %v1260
    %1277 = vadd.xlane.f32.xlu0 %v1276
    %v1278 = vpop.xlane.xlu0 %1277
    %v1279 = vadd.f32 %v1261, %v1262
    %1280 = vadd.xlane.f32.xlu0 %v1279
    %v1281 = vpop.xlane.xlu0 %1280
    %v1282 = vadd.f32 %v1263, %v1264
    %1283 = vadd.xlane.f32.xlu0 %v1282
    %v1284 = vpop.xlane.xlu0 %1283
    %v1285 = vadd.f32 %v1265, %v1266
    %1286 = vadd.xlane.f32.xlu0 %v1285
    %v1287 = vpop.xlane.xlu0 %1286
    %v1288 = vadd.f32 %v1267, %v1268
    %1289 = vadd.xlane.f32.xlu0 %v1288
    %v1290 = vpop.xlane.xlu0 %1289
    %v1291 = vadd.f32 %v1269, %v1270
    %1292 = vadd.xlane.f32.xlu0 %v1291
    %v1293 = vpop.xlane.xlu0 %1292
    %v1294 = vadd.f32 %v1271, %v1272
    %1295 = vadd.xlane.f32.xlu0 %v1294
    %v1296 = vpop.xlane.xlu0 %1295
    %v1297 = vmax.f32 %v1275, 1e-24
    %v1298 = vmax.f32 %v1278, 1e-24
    %v1299 = vmax.f32 %v1281, 1e-24
    %v1300 = vmax.f32 %v1284, 1e-24
    %v1301 = vmax.f32 %v1287, 1e-24
    %v1302 = vmax.f32 %v1290, 1e-24
    %v1303 = vmax.f32 %v1293, 1e-24
    %v1304 = vmax.f32 %v1296, 1e-24
    %v1305 = vrsqrt.pop %v1297
    %v1306 = vrsqrt.pop %v1298
    %v1307 = vrsqrt.pop %v1299
    %v1308 = vrsqrt.pop %v1300
    %v1309 = vrsqrt.pop %v1301
    %v1310 = vrsqrt.pop %v1302
    %v1311 = vrsqrt.pop %v1303
    %v1312 = vrsqrt.pop %v1304
    %v1313 = vmul.f32 %v846, %v1305
    %v1314 = vmul.f32 %v760, %v1305
    %v1315 = vmul.f32 %v847, %v1306
    %v1316 = vmul.f32 %v761, %v1306
    %v1317 = vmul.f32 %v848, %v1307
    %v1318 = vmul.f32 %v762, %v1307
    %v1319 = vmul.f32 %v849, %v1308
    %v1320 = vmul.f32 %v763, %v1308
    %v1321 = vmul.f32 %v850, %v1309
    %v1322 = vmul.f32 %v764, %v1309
    %v1323 = vmul.f32 %v851, %v1310
    %v1324 = vmul.f32 %v765, %v1310
    %v1325 = vmul.f32 %v852, %v1311
    %v1326 = vmul.f32 %v766, %v1311
    %v1327 = vmul.f32 %v853, %v1312
    %v1328 = vmul.f32 %v767, %v1312
    %1329 = vst [vmem:[%s9] sm:$0xff] %v1313
    %1330 = vst [vmem:[%s9 + $0x8] sm:$0xff] %v1314
    %1331 = vst [vmem:[%s9 + $0x10] sm:$0xff] %v1315
    %1332 = vst [vmem:[%s9 + $0x18] sm:$0xff] %v1316
    %1333 = vst [vmem:[%s9 + $0x20] sm:$0xff] %v1317
    %1334 = vst [vmem:[%s9 + $0x28] sm:$0xff] %v1318
    %1335 = vst [vmem:[%s9 + $0x30] sm:$0xff] %v1319
    %1336 = vst [vmem:[%s9 + $0x38] sm:$0xff] %v1320
    %1337 = vst [vmem:[%s9 + $0x40] sm:$0xff] %v1321
    %1338 = vst [vmem:[%s9 + $0x48] sm:$0xff] %v1322
    %1339 = vst [vmem:[%s9 + $0x50] sm:$0xff] %v1323
    %1340 = vst [vmem:[%s9 + $0x58] sm:$0xff] %v1324
    %1341 = vst [vmem:[%s9 + $0x60] sm:$0xff] %v1325
    %1342 = vst [vmem:[%s9 + $0x68] sm:$0xff] %v1326
    %1343 = vst [vmem:[%s9 + $0x70] sm:$0xff] %v1327
    %1344 = vst [vmem:[%s9 + $0x78] sm:$0xff] %v1328
    // Predicated region
    $region46: #{sssnet_forward.1} parent=1 // pred_check
      _
    $region47: #{sssnet_forward.1} parent=1 // pred_check_branch
      %1346 = sbr.rel (0) target = $region49
    $region48: #{sssnet_forward.1} parent=1 // pred_region
      _
    $region49: #{sssnet_forward.1} parent=1 // pred_fallthru
      _
    // Predicated region
    $region50: #{sssnet_forward.1} parent=1 // pred_check
      _
    $region51: #{sssnet_forward.1} parent=1 // pred_check_branch
      %1348 = sbr.rel (0) target = $region53
    $region52: #{sssnet_forward.1} parent=1 // pred_region
      _
    $region53: #{sssnet_forward.1} parent=1 // pred_fallthru
      _
    // Predicated region
    $region54: #{sssnet_forward.1} parent=1 // pred_check
      _
    $region55: #{sssnet_forward.1} parent=1 // pred_check_branch
      %1350 = sbr.rel (0) target = $region57
    $region56: #{sssnet_forward.1} parent=1 // pred_region
      _
    $region57: #{sssnet_forward.1} parent=1 // pred_fallthru
      _
    // Predicated region
    $region58: #{sssnet_forward.1} parent=1 // pred_check
      _
    $region59: #{sssnet_forward.1} parent=1 // pred_check_branch
      %1352 = sbr.rel (0) target = $region61
    $region60: #{sssnet_forward.1} parent=1 // pred_region
      _
    $region61: #{sssnet_forward.1} parent=1 // pred_fallthru
      _
    // Predicated region
    $region62: #{sssnet_forward.1} parent=1 // pred_check
      _
    $region63: #{sssnet_forward.1} parent=1 // pred_check_branch
      %1354 = sbr.rel (0) target = $region65
    $region64: #{sssnet_forward.1} parent=1 // pred_region
      _
    $region65: #{sssnet_forward.1} parent=1 // pred_fallthru
      _
    // Predicated region
    $region66: #{sssnet_forward.1} parent=1 // pred_check
      _
    $region67: #{sssnet_forward.1} parent=1 // pred_check_branch
      %1356 = sbr.rel (0) target = $region69
    $region68: #{sssnet_forward.1} parent=1 // pred_region
      _
    $region69: #{sssnet_forward.1} parent=1 // pred_fallthru
      _
    %1357 = vsyncpa [#allocation3], 1
    %1358 = vsyncpa [#allocation5], 1

</llo_original>
